<compile_context>
chip_gen: v5e
topology: v5e:2x2
jax: 0.10.0
libtpu: 0.0.40
codegen_flags: <defaults>
</compile_context>

<pallas_src>
import jax
import jax.numpy as jnp
from jax.experimental import pallas as pl
from jax.experimental.pallas import tpu as pltpu

# Problem sizes (small, consistent with the module: in_feats divisible by 16).
B = 2          # batch
C = 32         # in_feats
H = 16         # spatial height
W = 16         # spatial width  (power of two assumed for the cheap %W mask)
HW = H * W
K = 3          # kernel_size ("same" padding = K // 2)
RED = 16       # CALayer reduction rate
CR = C // RED  # reduced channels
RES_SCALE = 1.0


def _conv3x3(x_cp, w_ref, row_ok, col_ok):
    """3x3 "same" conv on a (C, H*W) value.

    x_cp:   (C, HW) f32 value (channels in sublanes, pixels in lanes)
    w_ref:  (K*K, C, C) ref, w_ref[kh*K+kw][c_out, c_in]
    row_ok/col_ok: dicts {-1,0,1} -> (1, HW) bool mask (or None) marking output
        pixels whose shifted source row/col stays in bounds.
    """
    acc = jnp.zeros((C, HW), jnp.float32)
    for kh in range(K):
        for kw in range(K):
            dh, dw = kh - 1, kw - 1
            s = dh * W + dw                      # flat source offset
            # shifted[c, p] = x[c, p + s]  (wrap-around is masked out below)
            t = x_cp if s == 0 else pltpu.roll(x_cp, shift=(-s) % HW, axis=1)
            mask = None
            for m in (row_ok[dh], col_ok[dw]):
                if m is not None:
                    mask = m if mask is None else jnp.logical_and(mask, m)
            if mask is not None:
                t = jnp.where(mask, t, 0.0)
            acc = acc + jnp.dot(w_ref[kh * K + kw], t,
                                preferred_element_type=jnp.float32)
    return acc


def _res_block_kernel(x_ref, w1_ref, b1_ref, w2_ref, b2_ref,
                      wd_ref, bd_ref, wu_ref, bu_ref, o_ref):
    """One batch element per grid step.

    x_ref:  (1, C, HW)      input (NCHW flattened over H,W)
    w1/w2:  (K*K, C, C)     conv weights, per-tap (C_out, C_in) matrices
    b1/b2:  (C, 1)
    wd:     (C, CR), bd: (1, CR)   CALayer squeeze (1x1 conv), weight transposed
    wu:     (C, CR), bu: (C, 1)    CALayer excite (1x1 conv), PyTorch (out,in) order
    o_ref:  (1, C, HW)
    """
    x = x_ref[0]                                           # (C, HW)

    # Boundary-validity masks (compile-time pattern, computed on the VPU).
    p = jax.lax.broadcasted_iota(jnp.int32, (1, HW), 1)    # flat pixel index
    wq = jnp.bitwise_and(p, W - 1)                         # p % W (W is pow2)
    row_ok = {-1: p >= W, 0: None, 1: p < (H - 1) * W}     # source row in bounds
    col_ok = {-1: wq >= 1, 0: None, 1: wq < (W - 1)}       # source col in bounds

    # conv1 + ReLU, then conv2 — all held in vregs, no padded scratch.
    y1 = jnp.maximum(_conv3x3(x, w1_ref, row_ok, col_ok) + b1_ref[...], 0.0)
    y2 = _conv3x3(y1, w2_ref, row_ok, col_ok) + b2_ref[...]          # (C, HW)

    # CALayer: global avg pool -> 1x1 conv -> ReLU -> 1x1 conv -> sigmoid.
    # Done as broadcast-multiply + reductions (no tiny M=1 MXU matmuls).
    pooled = jnp.mean(y2, axis=1, keepdims=True)                     # (C, 1)
    hid = jnp.maximum(
        jnp.sum(pooled * wd_ref[...], axis=0, keepdims=True) + bd_ref[...],
        0.0)                                                          # (1, CR)
    gate = jax.nn.sigmoid(
        jnp.sum(wu_ref[...] * hid, axis=1, keepdims=True) + bu_ref[...])  # (C, 1)

    # scale, res_scale, residual add.
    o_ref[0] = (y2 * gate) * RES_SCALE + x


@jax.jit
def spectral_attention_res_block(x, w1, b1, w2, b2, wd, bd, wu, bu):
    """x: (B, C, H, W) float32 (NCHW, PyTorch-native)."""
    Bn, Cn, Hn, Wn = x.shape
    xf = x.reshape(Bn, Cn, Hn * Wn)                       # free bitcast reshape

    grid_spec = pltpu.PrefetchScalarGridSpec(
        num_scalar_prefetch=0,
        grid=(Bn,),
        in_specs=[
            pl.BlockSpec((1, C, HW), lambda b: (b, 0, 0)),
            pl.BlockSpec((K * K, C, C), lambda b: (0, 0, 0)),
            pl.BlockSpec((C, 1), lambda b: (0, 0)),
            pl.BlockSpec((K * K, C, C), lambda b: (0, 0, 0)),
            pl.BlockSpec((C, 1), lambda b: (0, 0)),
            pl.BlockSpec((C, CR), lambda b: (0, 0)),
            pl.BlockSpec((1, CR), lambda b: (0, 0)),
            pl.BlockSpec((C, CR), lambda b: (0, 0)),
            pl.BlockSpec((C, 1), lambda b: (0, 0)),
        ],
        out_specs=pl.BlockSpec((1, C, HW), lambda b: (b, 0, 0)),
    )

    out = pl.pallas_call(
        _res_block_kernel,
        out_shape=jax.ShapeDtypeStruct((Bn, Cn, Hn * Wn), jnp.float32),
        grid_spec=grid_spec,
        compiler_params=pltpu.CompilerParams(
            dimension_semantics=("parallel",)),   # 2 TCs on v7x; cheap loop on v5e/v6e
    )(xf, w1, b1, w2, b2, wd, bd, wu, bu)
    return out.reshape(Bn, Cn, Hn, Wn)


def reference(x, w1, b1, w2, b2, wd, bd, wu, bu):
    """Pure-JAX reference matching the PyTorch forward (NCHW)."""
    k1 = w1.reshape(K, K, C, C).transpose(2, 3, 0, 1)     # -> OIHW
    y = jax.lax.conv_general_dilated(
        x, k1, (1, 1), "SAME",
        dimension_numbers=("NCHW", "OIHW", "NCHW")) + b1.reshape(1, C, 1, 1)
    y = jnp.maximum(y, 0.0)
    k2 = w2.reshape(K, K, C, C).transpose(2, 3, 0, 1)
    y = jax.lax.conv_general_dilated(
        y, k2, (1, 1), "SAME",
        dimension_numbers=("NCHW", "OIHW", "NCHW")) + b2.reshape(1, C, 1, 1)
    pooled = jnp.mean(y, axis=(2, 3))                     # (B, C)
    hid = jnp.maximum(pooled @ wd + bd, 0.0)              # (B, CR)
    gate = jax.nn.sigmoid(hid @ wu.T + bu.reshape(1, C))  # (B, C)
    res = y * gate[:, :, None, None]
    return res * RES_SCALE + x


if __name__ == "__main__":
    key = jax.random.PRNGKey(0)
    kx, k1, k2, k3, k4, k5, k6, k7, k8 = jax.random.split(key, 9)

    x = jax.random.normal(kx, (B, C, H, W), jnp.float32)

    # Deterministic synthetic parameters (module __init__ shapes, kernel-friendly layout).
    w1 = 0.05 * jax.random.normal(k1, (K * K, C, C), jnp.float32)  # conv1: per-tap (Cout, Cin)
    b1 = 0.05 * jax.random.normal(k2, (C, 1), jnp.float32)
    w2 = 0.05 * jax.random.normal(k3, (K * K, C, C), jnp.float32)  # conv2
    b2 = 0.05 * jax.random.normal(k4, (C, 1), jnp.float32)
    wd = 0.05 * jax.random.normal(k5, (C, CR), jnp.float32)        # CA squeeze (transposed)
    bd = 0.05 * jax.random.normal(k6, (1, CR), jnp.float32)
    wu = 0.05 * jax.random.normal(k7, (C, CR), jnp.float32)        # CA excite (out, in)
    bu = 0.05 * jax.random.normal(k8, (C, 1), jnp.float32)

    out = spectral_attention_res_block(x, w1, b1, w2, b2, wd, bd, wu, bu)
    out = jax.block_until_ready(out)

    ref = reference(x, w1, b1, w2, b2, wd, bd, wu, bu)
    assert out.shape == (B, C, H, W)
    assert jnp.allclose(out, ref, atol=1e-3, rtol=1e-3), \
        f"max abs err {jnp.max(jnp.abs(out - ref))}"

    print("KERNEL_OK")
</pallas_src>

<mosaic_0001>
module attributes {stable_mosaic.version = 11 : i64} {
  func.func @_res_block_kernel(%arg0: i32, %arg1: memref<1x32x256xf32, #tpu.memory_space<vmem>>, %arg2: memref<9x32x32xf32, #tpu.memory_space<vmem>>, %arg3: memref<32x1xf32, #tpu.memory_space<vmem>>, %arg4: memref<9x32x32xf32, #tpu.memory_space<vmem>>, %arg5: memref<32x1xf32, #tpu.memory_space<vmem>>, %arg6: memref<32x2xf32, #tpu.memory_space<vmem>>, %arg7: memref<1x2xf32, #tpu.memory_space<vmem>>, %arg8: memref<32x2xf32, #tpu.memory_space<vmem>>, %arg9: memref<32x1xf32, #tpu.memory_space<vmem>>, %arg10: memref<1x32x256xf32, #tpu.memory_space<vmem>>) attributes {dimension_semantics = [#tpu.dimension_semantics<parallel>], iteration_bounds = array<i64: 2>, scalar_prefetch = 0 : i64, scratch_operands = 0 : i64, tpu.core_type = #tpu.core_type<tc>, window_params = [{transform_indices = @transform_0, window_bounds = array<i64: 1, 32, 256>}, {pipeline_mode = #tpu.pipeline_mode<synchronous>, transform_indices = @transform_1, window_bounds = array<i64: 9, 32, 32>}, {pipeline_mode = #tpu.pipeline_mode<synchronous>, transform_indices = @transform_2, window_bounds = array<i64: 32, 1>}, {pipeline_mode = #tpu.pipeline_mode<synchronous>, transform_indices = @transform_3, window_bounds = array<i64: 9, 32, 32>}, {pipeline_mode = #tpu.pipeline_mode<synchronous>, transform_indices = @transform_4, window_bounds = array<i64: 32, 1>}, {pipeline_mode = #tpu.pipeline_mode<synchronous>, transform_indices = @transform_5, window_bounds = array<i64: 32, 2>}, {pipeline_mode = #tpu.pipeline_mode<synchronous>, transform_indices = @transform_6, window_bounds = array<i64: 1, 2>}, {pipeline_mode = #tpu.pipeline_mode<synchronous>, transform_indices = @transform_7, window_bounds = array<i64: 32, 2>}, {pipeline_mode = #tpu.pipeline_mode<synchronous>, transform_indices = @transform_8, window_bounds = array<i64: 32, 1>}, {transform_indices = @transform_9, window_bounds = array<i64: 1, 32, 256>}]} {
    %c0 = arith.constant 0 : index
    %c0_0 = arith.constant 0 : index
    %c0_1 = arith.constant 0 : index
    %0 = vector.load %arg1[%c0, %c0_0, %c0_1] : memref<1x32x256xf32, #tpu.memory_space<vmem>>, vector<1x32x256xf32>
    %1 = vector.shape_cast %0 : vector<1x32x256xf32> to vector<32x256xf32>
    %2 = tpu.iota {dimensions = array<i32: 1>} : vector<1x256xi32>
    %c15_i32 = arith.constant 15 : i32
    %3 = vector.broadcast %c15_i32 : i32 to vector<1x256xi32>
    %4 = arith.andi %2, %3 : vector<1x256xi32>
    %c16_i32 = arith.constant 16 : i32
    %5 = vector.broadcast %c16_i32 : i32 to vector<1x256xi32>
    %6 = arith.cmpi sge, %2, %5 : vector<1x256xi32>
    %c240_i32 = arith.constant 240 : i32
    %7 = vector.broadcast %c240_i32 : i32 to vector<1x256xi32>
    %8 = arith.cmpi slt, %2, %7 : vector<1x256xi32>
    %c1_i32 = arith.constant 1 : i32
    %9 = vector.broadcast %c1_i32 : i32 to vector<1x256xi32>
    %10 = arith.cmpi sge, %4, %9 : vector<1x256xi32>
    %c15_i32_2 = arith.constant 15 : i32
    %11 = vector.broadcast %c15_i32_2 : i32 to vector<1x256xi32>
    %12 = arith.cmpi slt, %4, %11 : vector<1x256xi32>
    %cst = arith.constant 0.000000e+00 : f32
    %13 = vector.broadcast %cst : f32 to vector<32x256xf32>
    %c17_i32 = arith.constant 17 : i32
    %14 = tpu.dynamic_rotate %1 by %c17_i32 dim 1 : vector<32x256xf32>, i32 -> vector<32x256xf32>
    %15 = arith.andi %6, %10 : vector<1x256xi1>
    %cst_3 = arith.constant 0.000000e+00 : f32
    %16 = vector.shape_cast %15 : vector<1x256xi1> to vector<1x256xi1>
    %17 = vector.broadcast %16 : vector<1x256xi1> to vector<32x256xi1>
    %18 = vector.broadcast %cst_3 : f32 to vector<32x256xf32>
    %19 = arith.select %17, %14, %18 : vector<32x256xi1>, vector<32x256xf32>
    %c0_4 = arith.constant 0 : index
    %c0_5 = arith.constant 0 : index
    %c0_6 = arith.constant 0 : index
    %20 = vector.load %arg2[%c0_4, %c0_5, %c0_6] : memref<9x32x32xf32, #tpu.memory_space<vmem>>, vector<1x32x32xf32>
    %21 = vector.shape_cast %20 : vector<1x32x32xf32> to vector<32x32xf32>
    %cst_7 = arith.constant dense<0.000000e+00> : vector<32x256xf32>
    %22 = tpu.matmul %21, %19, %cst_7 {dimension_numbers = #tpu.dot_dimension_numbers<[1], [0], [0], [1], [0, 0, 1, 1], [], []>} : vector<32x32xf32>, vector<32x256xf32>, vector<32x256xf32> -> vector<32x256xf32>
    %23 = arith.addf %13, %22 : vector<32x256xf32>
    %c16_i32_8 = arith.constant 16 : i32
    %24 = tpu.dynamic_rotate %1 by %c16_i32_8 dim 1 : vector<32x256xf32>, i32 -> vector<32x256xf32>
    %cst_9 = arith.constant 0.000000e+00 : f32
    %25 = vector.shape_cast %6 : vector<1x256xi1> to vector<1x256xi1>
    %26 = vector.broadcast %25 : vector<1x256xi1> to vector<32x256xi1>
    %27 = vector.broadcast %cst_9 : f32 to vector<32x256xf32>
    %28 = arith.select %26, %24, %27 : vector<32x256xi1>, vector<32x256xf32>
    %c1 = arith.constant 1 : index
    %c0_10 = arith.constant 0 : index
    %c0_11 = arith.constant 0 : index
    %29 = vector.load %arg2[%c1, %c0_10, %c0_11] : memref<9x32x32xf32, #tpu.memory_space<vmem>>, vector<1x32x32xf32>
    %30 = vector.shape_cast %29 : vector<1x32x32xf32> to vector<32x32xf32>
    %cst_12 = arith.constant dense<0.000000e+00> : vector<32x256xf32>
    %31 = tpu.matmul %30, %28, %cst_12 {dimension_numbers = #tpu.dot_dimension_numbers<[1], [0], [0], [1], [0, 0, 1, 1], [], []>} : vector<32x32xf32>, vector<32x256xf32>, vector<32x256xf32> -> vector<32x256xf32>
    %32 = arith.addf %23, %31 : vector<32x256xf32>
    %c15_i32_13 = arith.constant 15 : i32
    %33 = tpu.dynamic_rotate %1 by %c15_i32_13 dim 1 : vector<32x256xf32>, i32 -> vector<32x256xf32>
    %34 = arith.andi %6, %12 : vector<1x256xi1>
    %cst_14 = arith.constant 0.000000e+00 : f32
    %35 = vector.shape_cast %34 : vector<1x256xi1> to vector<1x256xi1>
    %36 = vector.broadcast %35 : vector<1x256xi1> to vector<32x256xi1>
    %37 = vector.broadcast %cst_14 : f32 to vector<32x256xf32>
    %38 = arith.select %36, %33, %37 : vector<32x256xi1>, vector<32x256xf32>
    %c2 = arith.constant 2 : index
    %c0_15 = arith.constant 0 : index
    %c0_16 = arith.constant 0 : index
    %39 = vector.load %arg2[%c2, %c0_15, %c0_16] : memref<9x32x32xf32, #tpu.memory_space<vmem>>, vector<1x32x32xf32>
    %40 = vector.shape_cast %39 : vector<1x32x32xf32> to vector<32x32xf32>
    %cst_17 = arith.constant dense<0.000000e+00> : vector<32x256xf32>
    %41 = tpu.matmul %40, %38, %cst_17 {dimension_numbers = #tpu.dot_dimension_numbers<[1], [0], [0], [1], [0, 0, 1, 1], [], []>} : vector<32x32xf32>, vector<32x256xf32>, vector<32x256xf32> -> vector<32x256xf32>
    %42 = arith.addf %32, %41 : vector<32x256xf32>
    %c1_i32_18 = arith.constant 1 : i32
    %43 = tpu.dynamic_rotate %1 by %c1_i32_18 dim 1 : vector<32x256xf32>, i32 -> vector<32x256xf32>
    %cst_19 = arith.constant 0.000000e+00 : f32
    %44 = vector.shape_cast %10 : vector<1x256xi1> to vector<1x256xi1>
    %45 = vector.broadcast %44 : vector<1x256xi1> to vector<32x256xi1>
    %46 = vector.broadcast %cst_19 : f32 to vector<32x256xf32>
    %47 = arith.select %45, %43, %46 : vector<32x256xi1>, vector<32x256xf32>
    %c3 = arith.constant 3 : index
    %c0_20 = arith.constant 0 : index
    %c0_21 = arith.constant 0 : index
    %48 = vector.load %arg2[%c3, %c0_20, %c0_21] : memref<9x32x32xf32, #tpu.memory_space<vmem>>, vector<1x32x32xf32>
    %49 = vector.shape_cast %48 : vector<1x32x32xf32> to vector<32x32xf32>
    %cst_22 = arith.constant dense<0.000000e+00> : vector<32x256xf32>
    %50 = tpu.matmul %49, %47, %cst_22 {dimension_numbers = #tpu.dot_dimension_numbers<[1], [0], [0], [1], [0, 0, 1, 1], [], []>} : vector<32x32xf32>, vector<32x256xf32>, vector<32x256xf32> -> vector<32x256xf32>
    %51 = arith.addf %42, %50 : vector<32x256xf32>
    %c4 = arith.constant 4 : index
    %c0_23 = arith.constant 0 : index
    %c0_24 = arith.constant 0 : index
    %52 = vector.load %arg2[%c4, %c0_23, %c0_24] : memref<9x32x32xf32, #tpu.memory_space<vmem>>, vector<1x32x32xf32>
    %53 = vector.shape_cast %52 : vector<1x32x32xf32> to vector<32x32xf32>
    %cst_25 = arith.constant dense<0.000000e+00> : vector<32x256xf32>
    %54 = tpu.matmul %53, %1, %cst_25 {dimension_numbers = #tpu.dot_dimension_numbers<[1], [0], [0], [1], [0, 0, 1, 1], [], []>} : vector<32x32xf32>, vector<32x256xf32>, vector<32x256xf32> -> vector<32x256xf32>
    %55 = arith.addf %51, %54 : vector<32x256xf32>
    %c255_i32 = arith.constant 255 : i32
    %56 = tpu.dynamic_rotate %1 by %c255_i32 dim 1 : vector<32x256xf32>, i32 -> vector<32x256xf32>
    %cst_26 = arith.constant 0.000000e+00 : f32
    %57 = vector.shape_cast %12 : vector<1x256xi1> to vector<1x256xi1>
    %58 = vector.broadcast %57 : vector<1x256xi1> to vector<32x256xi1>
    %59 = vector.broadcast %cst_26 : f32 to vector<32x256xf32>
    %60 = arith.select %58, %56, %59 : vector<32x256xi1>, vector<32x256xf32>
    %c5 = arith.constant 5 : index
    %c0_27 = arith.constant 0 : index
    %c0_28 = arith.constant 0 : index
    %61 = vector.load %arg2[%c5, %c0_27, %c0_28] : memref<9x32x32xf32, #tpu.memory_space<vmem>>, vector<1x32x32xf32>
    %62 = vector.shape_cast %61 : vector<1x32x32xf32> to vector<32x32xf32>
    %cst_29 = arith.constant dense<0.000000e+00> : vector<32x256xf32>
    %63 = tpu.matmul %62, %60, %cst_29 {dimension_numbers = #tpu.dot_dimension_numbers<[1], [0], [0], [1], [0, 0, 1, 1], [], []>} : vector<32x32xf32>, vector<32x256xf32>, vector<32x256xf32> -> vector<32x256xf32>
    %64 = arith.addf %55, %63 : vector<32x256xf32>
    %c241_i32 = arith.constant 241 : i32
    %65 = tpu.dynamic_rotate %1 by %c241_i32 dim 1 : vector<32x256xf32>, i32 -> vector<32x256xf32>
    %66 = arith.andi %8, %10 : vector<1x256xi1>
    %cst_30 = arith.constant 0.000000e+00 : f32
    %67 = vector.shape_cast %66 : vector<1x256xi1> to vector<1x256xi1>
    %68 = vector.broadcast %67 : vector<1x256xi1> to vector<32x256xi1>
    %69 = vector.broadcast %cst_30 : f32 to vector<32x256xf32>
    %70 = arith.select %68, %65, %69 : vector<32x256xi1>, vector<32x256xf32>
    %c6 = arith.constant 6 : index
    %c0_31 = arith.constant 0 : index
    %c0_32 = arith.constant 0 : index
    %71 = vector.load %arg2[%c6, %c0_31, %c0_32] : memref<9x32x32xf32, #tpu.memory_space<vmem>>, vector<1x32x32xf32>
    %72 = vector.shape_cast %71 : vector<1x32x32xf32> to vector<32x32xf32>
    %cst_33 = arith.constant dense<0.000000e+00> : vector<32x256xf32>
    %73 = tpu.matmul %72, %70, %cst_33 {dimension_numbers = #tpu.dot_dimension_numbers<[1], [0], [0], [1], [0, 0, 1, 1], [], []>} : vector<32x32xf32>, vector<32x256xf32>, vector<32x256xf32> -> vector<32x256xf32>
    %74 = arith.addf %64, %73 : vector<32x256xf32>
    %c240_i32_34 = arith.constant 240 : i32
    %75 = tpu.dynamic_rotate %1 by %c240_i32_34 dim 1 : vector<32x256xf32>, i32 -> vector<32x256xf32>
    %cst_35 = arith.constant 0.000000e+00 : f32
    %76 = vector.shape_cast %8 : vector<1x256xi1> to vector<1x256xi1>
    %77 = vector.broadcast %76 : vector<1x256xi1> to vector<32x256xi1>
    %78 = vector.broadcast %cst_35 : f32 to vector<32x256xf32>
    %79 = arith.select %77, %75, %78 : vector<32x256xi1>, vector<32x256xf32>
    %c7 = arith.constant 7 : index
    %c0_36 = arith.constant 0 : index
    %c0_37 = arith.constant 0 : index
    %80 = vector.load %arg2[%c7, %c0_36, %c0_37] : memref<9x32x32xf32, #tpu.memory_space<vmem>>, vector<1x32x32xf32>
    %81 = vector.shape_cast %80 : vector<1x32x32xf32> to vector<32x32xf32>
    %cst_38 = arith.constant dense<0.000000e+00> : vector<32x256xf32>
    %82 = tpu.matmul %81, %79, %cst_38 {dimension_numbers = #tpu.dot_dimension_numbers<[1], [0], [0], [1], [0, 0, 1, 1], [], []>} : vector<32x32xf32>, vector<32x256xf32>, vector<32x256xf32> -> vector<32x256xf32>
    %83 = arith.addf %74, %82 : vector<32x256xf32>
    %c239_i32 = arith.constant 239 : i32
    %84 = tpu.dynamic_rotate %1 by %c239_i32 dim 1 : vector<32x256xf32>, i32 -> vector<32x256xf32>
    %85 = arith.andi %8, %12 : vector<1x256xi1>
    %cst_39 = arith.constant 0.000000e+00 : f32
    %86 = vector.shape_cast %85 : vector<1x256xi1> to vector<1x256xi1>
    %87 = vector.broadcast %86 : vector<1x256xi1> to vector<32x256xi1>
    %88 = vector.broadcast %cst_39 : f32 to vector<32x256xf32>
    %89 = arith.select %87, %84, %88 : vector<32x256xi1>, vector<32x256xf32>
    %c8 = arith.constant 8 : index
    %c0_40 = arith.constant 0 : index
    %c0_41 = arith.constant 0 : index
    %90 = vector.load %arg2[%c8, %c0_40, %c0_41] : memref<9x32x32xf32, #tpu.memory_space<vmem>>, vector<1x32x32xf32>
    %91 = vector.shape_cast %90 : vector<1x32x32xf32> to vector<32x32xf32>
    %cst_42 = arith.constant dense<0.000000e+00> : vector<32x256xf32>
    %92 = tpu.matmul %91, %89, %cst_42 {dimension_numbers = #tpu.dot_dimension_numbers<[1], [0], [0], [1], [0, 0, 1, 1], [], []>} : vector<32x32xf32>, vector<32x256xf32>, vector<32x256xf32> -> vector<32x256xf32>
    %93 = arith.addf %83, %92 : vector<32x256xf32>
    %c0_43 = arith.constant 0 : index
    %c0_44 = arith.constant 0 : index
    %94 = vector.load %arg3[%c0_43, %c0_44] : memref<32x1xf32, #tpu.memory_space<vmem>>, vector<32x1xf32>
    %95 = vector.broadcast %94 : vector<32x1xf32> to vector<32x256xf32>
    %96 = arith.addf %93, %95 : vector<32x256xf32>
    %cst_45 = arith.constant 0.000000e+00 : f32
    %97 = vector.broadcast %cst_45 : f32 to vector<32x256xf32>
    %98 = arith.maximumf %96, %97 : vector<32x256xf32>
    %cst_46 = arith.constant 0.000000e+00 : f32
    %99 = vector.broadcast %cst_46 : f32 to vector<32x256xf32>
    %c17_i32_47 = arith.constant 17 : i32
    %100 = tpu.dynamic_rotate %98 by %c17_i32_47 dim 1 : vector<32x256xf32>, i32 -> vector<32x256xf32>
    %101 = arith.andi %6, %10 : vector<1x256xi1>
    %cst_48 = arith.constant 0.000000e+00 : f32
    %102 = vector.shape_cast %101 : vector<1x256xi1> to vector<1x256xi1>
    %103 = vector.broadcast %102 : vector<1x256xi1> to vector<32x256xi1>
    %104 = vector.broadcast %cst_48 : f32 to vector<32x256xf32>
    %105 = arith.select %103, %100, %104 : vector<32x256xi1>, vector<32x256xf32>
    %c0_49 = arith.constant 0 : index
    %c0_50 = arith.constant 0 : index
    %c0_51 = arith.constant 0 : index
    %106 = vector.load %arg4[%c0_49, %c0_50, %c0_51] : memref<9x32x32xf32, #tpu.memory_space<vmem>>, vector<1x32x32xf32>
    %107 = vector.shape_cast %106 : vector<1x32x32xf32> to vector<32x32xf32>
    %cst_52 = arith.constant dense<0.000000e+00> : vector<32x256xf32>
    %108 = tpu.matmul %107, %105, %cst_52 {dimension_numbers = #tpu.dot_dimension_numbers<[1], [0], [0], [1], [0, 0, 1, 1], [], []>} : vector<32x32xf32>, vector<32x256xf32>, vector<32x256xf32> -> vector<32x256xf32>
    %109 = arith.addf %99, %108 : vector<32x256xf32>
    %c16_i32_53 = arith.constant 16 : i32
    %110 = tpu.dynamic_rotate %98 by %c16_i32_53 dim 1 : vector<32x256xf32>, i32 -> vector<32x256xf32>
    %cst_54 = arith.constant 0.000000e+00 : f32
    %111 = vector.shape_cast %6 : vector<1x256xi1> to vector<1x256xi1>
    %112 = vector.broadcast %111 : vector<1x256xi1> to vector<32x256xi1>
    %113 = vector.broadcast %cst_54 : f32 to vector<32x256xf32>
    %114 = arith.select %112, %110, %113 : vector<32x256xi1>, vector<32x256xf32>
    %c1_55 = arith.constant 1 : index
    %c0_56 = arith.constant 0 : index
    %c0_57 = arith.constant 0 : index
    %115 = vector.load %arg4[%c1_55, %c0_56, %c0_57] : memref<9x32x32xf32, #tpu.memory_space<vmem>>, vector<1x32x32xf32>
    %116 = vector.shape_cast %115 : vector<1x32x32xf32> to vector<32x32xf32>
    %cst_58 = arith.constant dense<0.000000e+00> : vector<32x256xf32>
    %117 = tpu.matmul %116, %114, %cst_58 {dimension_numbers = #tpu.dot_dimension_numbers<[1], [0], [0], [1], [0, 0, 1, 1], [], []>} : vector<32x32xf32>, vector<32x256xf32>, vector<32x256xf32> -> vector<32x256xf32>
    %118 = arith.addf %109, %117 : vector<32x256xf32>
    %c15_i32_59 = arith.constant 15 : i32
    %119 = tpu.dynamic_rotate %98 by %c15_i32_59 dim 1 : vector<32x256xf32>, i32 -> vector<32x256xf32>
    %120 = arith.andi %6, %12 : vector<1x256xi1>
    %cst_60 = arith.constant 0.000000e+00 : f32
    %121 = vector.shape_cast %120 : vector<1x256xi1> to vector<1x256xi1>
    %122 = vector.broadcast %121 : vector<1x256xi1> to vector<32x256xi1>
    %123 = vector.broadcast %cst_60 : f32 to vector<32x256xf32>
    %124 = arith.select %122, %119, %123 : vector<32x256xi1>, vector<32x256xf32>
    %c2_61 = arith.constant 2 : index
    %c0_62 = arith.constant 0 : index
    %c0_63 = arith.constant 0 : index
    %125 = vector.load %arg4[%c2_61, %c0_62, %c0_63] : memref<9x32x32xf32, #tpu.memory_space<vmem>>, vector<1x32x32xf32>
    %126 = vector.shape_cast %125 : vector<1x32x32xf32> to vector<32x32xf32>
    %cst_64 = arith.constant dense<0.000000e+00> : vector<32x256xf32>
    %127 = tpu.matmul %126, %124, %cst_64 {dimension_numbers = #tpu.dot_dimension_numbers<[1], [0], [0], [1], [0, 0, 1, 1], [], []>} : vector<32x32xf32>, vector<32x256xf32>, vector<32x256xf32> -> vector<32x256xf32>
    %128 = arith.addf %118, %127 : vector<32x256xf32>
    %c1_i32_65 = arith.constant 1 : i32
    %129 = tpu.dynamic_rotate %98 by %c1_i32_65 dim 1 : vector<32x256xf32>, i32 -> vector<32x256xf32>
    %cst_66 = arith.constant 0.000000e+00 : f32
    %130 = vector.shape_cast %10 : vector<1x256xi1> to vector<1x256xi1>
    %131 = vector.broadcast %130 : vector<1x256xi1> to vector<32x256xi1>
    %132 = vector.broadcast %cst_66 : f32 to vector<32x256xf32>
    %133 = arith.select %131, %129, %132 : vector<32x256xi1>, vector<32x256xf32>
    %c3_67 = arith.constant 3 : index
    %c0_68 = arith.constant 0 : index
    %c0_69 = arith.constant 0 : index
    %134 = vector.load %arg4[%c3_67, %c0_68, %c0_69] : memref<9x32x32xf32, #tpu.memory_space<vmem>>, vector<1x32x32xf32>
    %135 = vector.shape_cast %134 : vector<1x32x32xf32> to vector<32x32xf32>
    %cst_70 = arith.constant dense<0.000000e+00> : vector<32x256xf32>
    %136 = tpu.matmul %135, %133, %cst_70 {dimension_numbers = #tpu.dot_dimension_numbers<[1], [0], [0], [1], [0, 0, 1, 1], [], []>} : vector<32x32xf32>, vector<32x256xf32>, vector<32x256xf32> -> vector<32x256xf32>
    %137 = arith.addf %128, %136 : vector<32x256xf32>
    %c4_71 = arith.constant 4 : index
    %c0_72 = arith.constant 0 : index
    %c0_73 = arith.constant 0 : index
    %138 = vector.load %arg4[%c4_71, %c0_72, %c0_73] : memref<9x32x32xf32, #tpu.memory_space<vmem>>, vector<1x32x32xf32>
    %139 = vector.shape_cast %138 : vector<1x32x32xf32> to vector<32x32xf32>
    %cst_74 = arith.constant dense<0.000000e+00> : vector<32x256xf32>
    %140 = tpu.matmul %139, %98, %cst_74 {dimension_numbers = #tpu.dot_dimension_numbers<[1], [0], [0], [1], [0, 0, 1, 1], [], []>} : vector<32x32xf32>, vector<32x256xf32>, vector<32x256xf32> -> vector<32x256xf32>
    %141 = arith.addf %137, %140 : vector<32x256xf32>
    %c255_i32_75 = arith.constant 255 : i32
    %142 = tpu.dynamic_rotate %98 by %c255_i32_75 dim 1 : vector<32x256xf32>, i32 -> vector<32x256xf32>
    %cst_76 = arith.constant 0.000000e+00 : f32
    %143 = vector.shape_cast %12 : vector<1x256xi1> to vector<1x256xi1>
    %144 = vector.broadcast %143 : vector<1x256xi1> to vector<32x256xi1>
    %145 = vector.broadcast %cst_76 : f32 to vector<32x256xf32>
    %146 = arith.select %144, %142, %145 : vector<32x256xi1>, vector<32x256xf32>
    %c5_77 = arith.constant 5 : index
    %c0_78 = arith.constant 0 : index
    %c0_79 = arith.constant 0 : index
    %147 = vector.load %arg4[%c5_77, %c0_78, %c0_79] : memref<9x32x32xf32, #tpu.memory_space<vmem>>, vector<1x32x32xf32>
    %148 = vector.shape_cast %147 : vector<1x32x32xf32> to vector<32x32xf32>
    %cst_80 = arith.constant dense<0.000000e+00> : vector<32x256xf32>
    %149 = tpu.matmul %148, %146, %cst_80 {dimension_numbers = #tpu.dot_dimension_numbers<[1], [0], [0], [1], [0, 0, 1, 1], [], []>} : vector<32x32xf32>, vector<32x256xf32>, vector<32x256xf32> -> vector<32x256xf32>
    %150 = arith.addf %141, %149 : vector<32x256xf32>
    %c241_i32_81 = arith.constant 241 : i32
    %151 = tpu.dynamic_rotate %98 by %c241_i32_81 dim 1 : vector<32x256xf32>, i32 -> vector<32x256xf32>
    %152 = arith.andi %8, %10 : vector<1x256xi1>
    %cst_82 = arith.constant 0.000000e+00 : f32
    %153 = vector.shape_cast %152 : vector<1x256xi1> to vector<1x256xi1>
    %154 = vector.broadcast %153 : vector<1x256xi1> to vector<32x256xi1>
    %155 = vector.broadcast %cst_82 : f32 to vector<32x256xf32>
    %156 = arith.select %154, %151, %155 : vector<32x256xi1>, vector<32x256xf32>
    %c6_83 = arith.constant 6 : index
    %c0_84 = arith.constant 0 : index
    %c0_85 = arith.constant 0 : index
    %157 = vector.load %arg4[%c6_83, %c0_84, %c0_85] : memref<9x32x32xf32, #tpu.memory_space<vmem>>, vector<1x32x32xf32>
    %158 = vector.shape_cast %157 : vector<1x32x32xf32> to vector<32x32xf32>
    %cst_86 = arith.constant dense<0.000000e+00> : vector<32x256xf32>
    %159 = tpu.matmul %158, %156, %cst_86 {dimension_numbers = #tpu.dot_dimension_numbers<[1], [0], [0], [1], [0, 0, 1, 1], [], []>} : vector<32x32xf32>, vector<32x256xf32>, vector<32x256xf32> -> vector<32x256xf32>
    %160 = arith.addf %150, %159 : vector<32x256xf32>
    %c240_i32_87 = arith.constant 240 : i32
    %161 = tpu.dynamic_rotate %98 by %c240_i32_87 dim 1 : vector<32x256xf32>, i32 -> vector<32x256xf32>
    %cst_88 = arith.constant 0.000000e+00 : f32
    %162 = vector.shape_cast %8 : vector<1x256xi1> to vector<1x256xi1>
    %163 = vector.broadcast %162 : vector<1x256xi1> to vector<32x256xi1>
    %164 = vector.broadcast %cst_88 : f32 to vector<32x256xf32>
    %165 = arith.select %163, %161, %164 : vector<32x256xi1>, vector<32x256xf32>
    %c7_89 = arith.constant 7 : index
    %c0_90 = arith.constant 0 : index
    %c0_91 = arith.constant 0 : index
    %166 = vector.load %arg4[%c7_89, %c0_90, %c0_91] : memref<9x32x32xf32, #tpu.memory_space<vmem>>, vector<1x32x32xf32>
    %167 = vector.shape_cast %166 : vector<1x32x32xf32> to vector<32x32xf32>
    %cst_92 = arith.constant dense<0.000000e+00> : vector<32x256xf32>
    %168 = tpu.matmul %167, %165, %cst_92 {dimension_numbers = #tpu.dot_dimension_numbers<[1], [0], [0], [1], [0, 0, 1, 1], [], []>} : vector<32x32xf32>, vector<32x256xf32>, vector<32x256xf32> -> vector<32x256xf32>
    %169 = arith.addf %160, %168 : vector<32x256xf32>
    %c239_i32_93 = arith.constant 239 : i32
    %170 = tpu.dynamic_rotate %98 by %c239_i32_93 dim 1 : vector<32x256xf32>, i32 -> vector<32x256xf32>
    %171 = arith.andi %8, %12 : vector<1x256xi1>
    %cst_94 = arith.constant 0.000000e+00 : f32
    %172 = vector.shape_cast %171 : vector<1x256xi1> to vector<1x256xi1>
    %173 = vector.broadcast %172 : vector<1x256xi1> to vector<32x256xi1>
    %174 = vector.broadcast %cst_94 : f32 to vector<32x256xf32>
    %175 = arith.select %173, %170, %174 : vector<32x256xi1>, vector<32x256xf32>
    %c8_95 = arith.constant 8 : index
    %c0_96 = arith.constant 0 : index
    %c0_97 = arith.constant 0 : index
    %176 = vector.load %arg4[%c8_95, %c0_96, %c0_97] : memref<9x32x32xf32, #tpu.memory_space<vmem>>, vector<1x32x32xf32>
    %177 = vector.shape_cast %176 : vector<1x32x32xf32> to vector<32x32xf32>
    %cst_98 = arith.constant dense<0.000000e+00> : vector<32x256xf32>
    %178 = tpu.matmul %177, %175, %cst_98 {dimension_numbers = #tpu.dot_dimension_numbers<[1], [0], [0], [1], [0, 0, 1, 1], [], []>} : vector<32x32xf32>, vector<32x256xf32>, vector<32x256xf32> -> vector<32x256xf32>
    %179 = arith.addf %169, %178 : vector<32x256xf32>
    %c0_99 = arith.constant 0 : index
    %c0_100 = arith.constant 0 : index
    %180 = vector.load %arg5[%c0_99, %c0_100] : memref<32x1xf32, #tpu.memory_space<vmem>>, vector<32x1xf32>
    %181 = vector.broadcast %180 : vector<32x1xf32> to vector<32x256xf32>
    %182 = arith.addf %179, %181 : vector<32x256xf32>
    %cst_101 = arith.constant dense<0.000000e+00> : vector<32xf32>
    %183 = vector.multi_reduction <add>, %182, %cst_101 [1] : vector<32x256xf32> to vector<32xf32>
    %184 = vector.shape_cast %183 : vector<32xf32> to vector<32x1xf32>
    %cst_102 = arith.constant 2.560000e+02 : f32
    %185 = vector.broadcast %cst_102 : f32 to vector<32x1xf32>
    %186 = arith.divf %184, %185 : vector<32x1xf32>
    %c0_103 = arith.constant 0 : index
    %c0_104 = arith.constant 0 : index
    %187 = vector.load %arg6[%c0_103, %c0_104] : memref<32x2xf32, #tpu.memory_space<vmem>>, vector<32x2xf32>
    %188 = vector.broadcast %186 : vector<32x1xf32> to vector<32x2xf32>
    %189 = arith.mulf %188, %187 : vector<32x2xf32>
    %cst_105 = arith.constant dense<0.000000e+00> : vector<2xf32>
    %190 = vector.multi_reduction <add>, %189, %cst_105 [0] : vector<32x2xf32> to vector<2xf32>
    %191 = vector.shape_cast %190 : vector<2xf32> to vector<1x2xf32>
    %c0_106 = arith.constant 0 : index
    %c0_107 = arith.constant 0 : index
    %192 = vector.load %arg7[%c0_106, %c0_107] : memref<1x2xf32, #tpu.memory_space<vmem>>, vector<1x2xf32>
    %193 = arith.addf %191, %192 : vector<1x2xf32>
    %cst_108 = arith.constant 0.000000e+00 : f32
    %194 = vector.broadcast %cst_108 : f32 to vector<1x2xf32>
    %195 = arith.maximumf %193, %194 : vector<1x2xf32>
    %c0_109 = arith.constant 0 : index
    %c0_110 = arith.constant 0 : index
    %196 = vector.load %arg8[%c0_109, %c0_110] : memref<32x2xf32, #tpu.memory_space<vmem>>, vector<32x2xf32>
    %197 = vector.broadcast %195 : vector<1x2xf32> to vector<32x2xf32>
    %198 = arith.mulf %196, %197 : vector<32x2xf32>
    %cst_111 = arith.constant dense<0.000000e+00> : vector<32xf32>
    %199 = vector.multi_reduction <add>, %198, %cst_111 [1] : vector<32x2xf32> to vector<32xf32>
    %200 = vector.shape_cast %199 : vector<32xf32> to vector<32x1xf32>
    %c0_112 = arith.constant 0 : index
    %c0_113 = arith.constant 0 : index
    %201 = vector.load %arg9[%c0_112, %c0_113] : memref<32x1xf32, #tpu.memory_space<vmem>>, vector<32x1xf32>
    %202 = arith.addf %200, %201 : vector<32x1xf32>
    %203 = arith.negf %202 : vector<32x1xf32>
    %204 = math.exp %203 : vector<32x1xf32>
    %cst_114 = arith.constant 1.000000e+00 : f32
    %205 = vector.broadcast %cst_114 : f32 to vector<32x1xf32>
    %206 = arith.addf %205, %204 : vector<32x1xf32>
    %207 = arith.divf %205, %206 : vector<32x1xf32>
    %208 = vector.broadcast %207 : vector<32x1xf32> to vector<32x256xf32>
    %209 = arith.mulf %182, %208 : vector<32x256xf32>
    %cst_115 = arith.constant 1.000000e+00 : f32
    %210 = vector.broadcast %cst_115 : f32 to vector<32x256xf32>
    %211 = arith.mulf %209, %210 : vector<32x256xf32>
    %212 = arith.addf %211, %1 : vector<32x256xf32>
    %c0_116 = arith.constant 0 : index
    %c0_117 = arith.constant 0 : index
    %c0_118 = arith.constant 0 : index
    %213 = vector.load %arg10[%c0_116, %c0_117, %c0_118] : memref<1x32x256xf32, #tpu.memory_space<vmem>>, vector<1x32x256xf32>
    %214 = vector.shape_cast %213 : vector<1x32x256xf32> to vector<32x256xf32>
    %215 = vector.shape_cast %212 : vector<32x256xf32> to vector<1x32x256xf32>
    tpu.vector_store %arg10[%c0_116, %c0_117, %c0_118], %215 {strides = array<i32>} : memref<1x32x256xf32, #tpu.memory_space<vmem>>, vector<1x32x256xf32>,
    return
  }
  func.func @transform_0(%arg0: i32) -> (i32, i32, i32) {
    %c0_i32 = arith.constant 0 : i32
    %c0_i32_0 = arith.constant 0 : i32
    %c0_i32_1 = arith.constant 0 : i32
    return %arg0, %c0_i32, %c0_i32_0 : i32, i32, i32
  }
  func.func @transform_1(%arg0: i32) -> (i32, i32, i32) {
    %c0_i32 = arith.constant 0 : i32
    %c0_i32_0 = arith.constant 0 : i32
    %c0_i32_1 = arith.constant 0 : i32
    %c0_i32_2 = arith.constant 0 : i32
    return %c0_i32, %c0_i32_0, %c0_i32_1 : i32, i32, i32
  }
  func.func @transform_2(%arg0: i32) -> (i32, i32) {
    %c0_i32 = arith.constant 0 : i32
    %c0_i32_0 = arith.constant 0 : i32
    %c0_i32_1 = arith.constant 0 : i32
    return %c0_i32, %c0_i32_0 : i32, i32
  }
  func.func @transform_3(%arg0: i32) -> (i32, i32, i32) {
    %c0_i32 = arith.constant 0 : i32
    %c0_i32_0 = arith.constant 0 : i32
    %c0_i32_1 = arith.constant 0 : i32
    %c0_i32_2 = arith.constant 0 : i32
    return %c0_i32, %c0_i32_0, %c0_i32_1 : i32, i32, i32
  }
  func.func @transform_4(%arg0: i32) -> (i32, i32) {
    %c0_i32 = arith.constant 0 : i32
    %c0_i32_0 = arith.constant 0 : i32
    %c0_i32_1 = arith.constant 0 : i32
    return %c0_i32, %c0_i32_0 : i32, i32
  }
  func.func @transform_5(%arg0: i32) -> (i32, i32) {
    %c0_i32 = arith.constant 0 : i32
    %c0_i32_0 = arith.constant 0 : i32
    %c0_i32_1 = arith.constant 0 : i32
    return %c0_i32, %c0_i32_0 : i32, i32
  }
  func.func @transform_6(%arg0: i32) -> (i32, i32) {
    %c0_i32 = arith.constant 0 : i32
    %c0_i32_0 = arith.constant 0 : i32
    %c0_i32_1 = arith.constant 0 : i32
    return %c0_i32, %c0_i32_0 : i32, i32
  }
  func.func @transform_7(%arg0: i32) -> (i32, i32) {
    %c0_i32 = arith.constant 0 : i32
    %c0_i32_0 = arith.constant 0 : i32
    %c0_i32_1 = arith.constant 0 : i32
    return %c0_i32, %c0_i32_0 : i32, i32
  }
  func.func @transform_8(%arg0: i32) -> (i32, i32) {
    %c0_i32 = arith.constant 0 : i32
    %c0_i32_0 = arith.constant 0 : i32
    %c0_i32_1 = arith.constant 0 : i32
    return %c0_i32, %c0_i32_0 : i32, i32
  }
  func.func @transform_9(%arg0: i32) -> (i32, i32, i32) {
    %c0_i32 = arith.constant 0 : i32
    %c0_i32_0 = arith.constant 0 : i32
    %c0_i32_1 = arith.constant 0 : i32
    return %arg0, %c0_i32, %c0_i32_0 : i32, i32, i32
  }
}

</mosaic_0001>

<llo_original>
// kernel: spectral_attention_res_block.1
$region0: #{spectral_attention_res_block.1}
  #allocation0 [shape = 'u32[]', space=smem, size = 0x4, offset = 0x4, fixed_abs, tag = 'smem constant byte address 0x4 - core index']
  #allocation1 [shape = 'u32[72,128]{1,0:T(1,128)}', space=vmem, size = 0x9000, scoped, tag = 'internal scratch']
  %s0 = inlined_call_operand.vmem [shape: f32[2,32,256], index: 0, kind: input, shape index: {}]
  %s1 = inlined_call_operand.vmem [shape: f32[9,32,32], index: 1, kind: input, shape index: {}]
  %s2 = inlined_call_operand.vmem [shape: f32[32,1], index: 2, kind: input, shape index: {}]
  %s3 = inlined_call_operand.vmem [shape: f32[9,32,32], index: 3, kind: input, shape index: {}]
  %s4 = inlined_call_operand.vmem [shape: f32[32,1], index: 4, kind: input, shape index: {}]
  %s5 = inlined_call_operand.vmem [shape: f32[32,2], index: 5, kind: input, shape index: {}]
  %s6 = inlined_call_operand.vmem [shape: f32[1,2], index: 6, kind: input, shape index: {}]
  %s7 = inlined_call_operand.vmem [shape: f32[32,2], index: 7, kind: input, shape index: {}]
  %s8 = inlined_call_operand.vmem [shape: f32[32,1], index: 8, kind: input, shape index: {}]
  %s9 = inlined_call_operand.vmem [shape: f32[2,32,256], index: 9, kind: output, shape index: {}]
  %s10 = sld [smem:[#allocation0]]
  $region69: #{spectral_attention_res_block.1} parent=0
    _
  %s12 = ssub.s32 1, %s10
  %s13 = scalar_select 0, %s12, %s10
  loop: start=0, step=1, limit=4
  $region2: #{spectral_attention_res_block.1} parent=0 // loop_pre_header
    _
  $region3: #{spectral_attention_res_block.1} parent=0 // loop_header
    %s15 = sphi 0, %s19
    %p16 = scmp.ge.s32.totalorder %s15, 4
    %s25 = sphi 0, %s27
    %s28 = sphi 0, %s25
    %s29 = sphi 0, %s28
    %s45 = sphi 0, %s29
    %s49 = sphi 0, %s49
    %s51 = sphi 0, %s49
    %s52 = sphi 0, %s51
    %s66 = sphi 0, %s52
    %s70 = sphi 0, %s70
    %s72 = sphi 0, %s70
    %s73 = sphi 0, %s72
    %s87 = sphi 0, %s73
    %s91 = sphi 0, %s91
    %s93 = sphi 0, %s91
    %s94 = sphi 0, %s93
    %s108 = sphi 0, %s94
    %s112 = sphi 0, %s112
    %s114 = sphi 0, %s112
    %s115 = sphi 0, %s114
    %s129 = sphi 0, %s115
    %s133 = sphi 0, %s133
    %s135 = sphi 0, %s133
    %s136 = sphi 0, %s135
    %s150 = sphi 0, %s136
    %s154 = sphi 0, %s154
    %s156 = sphi 0, %s154
    %s157 = sphi 0, %s156
    %s171 = sphi 0, %s157
    %s175 = sphi 0, %s175
    %s177 = sphi 0, %s175
    %s178 = sphi 0, %s177
    %s192 = sphi 0, %s178
    %s196 = sphi 0, %s196
    %s198 = sphi 0, %s196
    %s199 = sphi 0, %s198
    %s213 = sphi 0, %s199
    %s219 = sphi 0, %s221
    %s222 = sphi 0, %s219
    %s223 = sphi 0, %s222
    %s239 = sphi 0, %s223
  $region4: #{spectral_attention_res_block.1} parent=0 // loop_header_branch
    %18 = sbr.rel (%p16) target = $region8
  $region5: #{spectral_attention_res_block.1} parent=0 // loop_body
    %s20 = ssub.s32 %s15, 1
    %s21 = ssub.s32 %s15, 2
    %s22 = sadd.s32 %s15, 1
    %s23 = ssub.s32 %s15, %s22
    %p24 = scmp.eq.s32.totalorder %s23, 0
    %s26 = sadd.s32 %s25, 1
    %s27 = scalar_select %p24, %s25, %s26
    %p30 = pneg %p24
    %p31 = scmp.eq.s32.totalorder %s15, 1
    %p32 = por %p30, %p31
    %p33 = scmp.ne.s32.totalorder %s25, %s28
    %p34 = scmp.eq.s32.totalorder %s15, 0
    %p35 = por %p33, %p34
    %p36 = scmp.ne.s32.totalorder %s25, %s28
    %p37 = scmp.eq.s32.totalorder %s20, 1
    %p38 = por %p36, %p37
    %p39 = scmp.ne.s32.totalorder %s28, %s29
    %p40 = scmp.eq.s32.totalorder %s20, 0
    %p41 = por %p39, %p40
    %p42 = scmp.ne.s32.totalorder %s28, %s29
    %p43 = scmp.eq.s32.totalorder %s21, 1
    %p44 = por %p42, %p43
    %p46 = scmp.ne.s32.totalorder %s29, %s45
    %p47 = scmp.eq.s32.totalorder %s21, 0
    %p48 = por %p46, %p47
    %s50 = sadd.s32 %s49, 1
    %p53 = scmp.eq.s32.totalorder %s15, 1
    %p54 = scmp.ne.s32.totalorder %s49, %s51
    %p55 = scmp.eq.s32.totalorder %s15, 0
    %p56 = por %p54, %p55
    %p57 = scmp.ne.s32.totalorder %s49, %s51
    %p58 = scmp.eq.s32.totalorder %s20, 1
    %p59 = por %p57, %p58
    %p60 = scmp.ne.s32.totalorder %s51, %s52
    %p61 = scmp.eq.s32.totalorder %s20, 0
    %p62 = por %p60, %p61
    %p63 = scmp.ne.s32.totalorder %s51, %s52
    %p64 = scmp.eq.s32.totalorder %s21, 1
    %p65 = por %p63, %p64
    %p67 = scmp.ne.s32.totalorder %s52, %s66
    %p68 = scmp.eq.s32.totalorder %s21, 0
    %p69 = por %p67, %p68
    %s71 = sadd.s32 %s70, 1
    %p74 = scmp.eq.s32.totalorder %s15, 1
    %p75 = scmp.ne.s32.totalorder %s70, %s72
    %p76 = scmp.eq.s32.totalorder %s15, 0
    %p77 = por %p75, %p76
    %p78 = scmp.ne.s32.totalorder %s70, %s72
    %p79 = scmp.eq.s32.totalorder %s20, 1
    %p80 = por %p78, %p79
    %p81 = scmp.ne.s32.totalorder %s72, %s73
    %p82 = scmp.eq.s32.totalorder %s20, 0
    %p83 = por %p81, %p82
    %p84 = scmp.ne.s32.totalorder %s72, %s73
    %p85 = scmp.eq.s32.totalorder %s21, 1
    %p86 = por %p84, %p85
    %p88 = scmp.ne.s32.totalorder %s73, %s87
    %p89 = scmp.eq.s32.totalorder %s21, 0
    %p90 = por %p88, %p89
    %s92 = sadd.s32 %s91, 1
    %p95 = scmp.eq.s32.totalorder %s15, 1
    %p96 = scmp.ne.s32.totalorder %s91, %s93
    %p97 = scmp.eq.s32.totalorder %s15, 0
    %p98 = por %p96, %p97
    %p99 = scmp.ne.s32.totalorder %s91, %s93
    %p100 = scmp.eq.s32.totalorder %s20, 1
    %p101 = por %p99, %p100
    %p102 = scmp.ne.s32.totalorder %s93, %s94
    %p103 = scmp.eq.s32.totalorder %s20, 0
    %p104 = por %p102, %p103
    %p105 = scmp.ne.s32.totalorder %s93, %s94
    %p106 = scmp.eq.s32.totalorder %s21, 1
    %p107 = por %p105, %p106
    %p109 = scmp.ne.s32.totalorder %s94, %s108
    %p110 = scmp.eq.s32.totalorder %s21, 0
    %p111 = por %p109, %p110
    %s113 = sadd.s32 %s112, 1
    %p116 = scmp.eq.s32.totalorder %s15, 1
    %p117 = scmp.ne.s32.totalorder %s112, %s114
    %p118 = scmp.eq.s32.totalorder %s15, 0
    %p119 = por %p117, %p118
    %p120 = scmp.ne.s32.totalorder %s112, %s114
    %p121 = scmp.eq.s32.totalorder %s20, 1
    %p122 = por %p120, %p121
    %p123 = scmp.ne.s32.totalorder %s114, %s115
    %p124 = scmp.eq.s32.totalorder %s20, 0
    %p125 = por %p123, %p124
    %p126 = scmp.ne.s32.totalorder %s114, %s115
    %p127 = scmp.eq.s32.totalorder %s21, 1
    %p128 = por %p126, %p127
    %p130 = scmp.ne.s32.totalorder %s115, %s129
    %p131 = scmp.eq.s32.totalorder %s21, 0
    %p132 = por %p130, %p131
    %s134 = sadd.s32 %s133, 1
    %p137 = scmp.eq.s32.totalorder %s15, 1
    %p138 = scmp.ne.s32.totalorder %s133, %s135
    %p139 = scmp.eq.s32.totalorder %s15, 0
    %p140 = por %p138, %p139
    %p141 = scmp.ne.s32.totalorder %s133, %s135
    %p142 = scmp.eq.s32.totalorder %s20, 1
    %p143 = por %p141, %p142
    %p144 = scmp.ne.s32.totalorder %s135, %s136
    %p145 = scmp.eq.s32.totalorder %s20, 0
    %p146 = por %p144, %p145
    %p147 = scmp.ne.s32.totalorder %s135, %s136
    %p148 = scmp.eq.s32.totalorder %s21, 1
    %p149 = por %p147, %p148
    %p151 = scmp.ne.s32.totalorder %s136, %s150
    %p152 = scmp.eq.s32.totalorder %s21, 0
    %p153 = por %p151, %p152
    %s155 = sadd.s32 %s154, 1
    %p158 = scmp.eq.s32.totalorder %s15, 1
    %p159 = scmp.ne.s32.totalorder %s154, %s156
    %p160 = scmp.eq.s32.totalorder %s15, 0
    %p161 = por %p159, %p160
    %p162 = scmp.ne.s32.totalorder %s154, %s156
    %p163 = scmp.eq.s32.totalorder %s20, 1
    %p164 = por %p162, %p163
    %p165 = scmp.ne.s32.totalorder %s156, %s157
    %p166 = scmp.eq.s32.totalorder %s20, 0
    %p167 = por %p165, %p166
    %p168 = scmp.ne.s32.totalorder %s156, %s157
    %p169 = scmp.eq.s32.totalorder %s21, 1
    %p170 = por %p168, %p169
    %p172 = scmp.ne.s32.totalorder %s157, %s171
    %p173 = scmp.eq.s32.totalorder %s21, 0
    %p174 = por %p172, %p173
    %s176 = sadd.s32 %s175, 1
    %p179 = scmp.eq.s32.totalorder %s15, 1
    %p180 = scmp.ne.s32.totalorder %s175, %s177
    %p181 = scmp.eq.s32.totalorder %s15, 0
    %p182 = por %p180, %p181
    %p183 = scmp.ne.s32.totalorder %s175, %s177
    %p184 = scmp.eq.s32.totalorder %s20, 1
    %p185 = por %p183, %p184
    %p186 = scmp.ne.s32.totalorder %s177, %s178
    %p187 = scmp.eq.s32.totalorder %s20, 0
    %p188 = por %p186, %p187
    %p189 = scmp.ne.s32.totalorder %s177, %s178
    %p190 = scmp.eq.s32.totalorder %s21, 1
    %p191 = por %p189, %p190
    %p193 = scmp.ne.s32.totalorder %s178, %s192
    %p194 = scmp.eq.s32.totalorder %s21, 0
    %p195 = por %p193, %p194
    %s197 = sadd.s32 %s196, 1
    %p200 = scmp.eq.s32.totalorder %s15, 1
    %p201 = scmp.ne.s32.totalorder %s196, %s198
    %p202 = scmp.eq.s32.totalorder %s15, 0
    %p203 = por %p201, %p202
    %p204 = scmp.ne.s32.totalorder %s196, %s198
    %p205 = scmp.eq.s32.totalorder %s20, 1
    %p206 = por %p204, %p205
    %p207 = scmp.ne.s32.totalorder %s198, %s199
    %p208 = scmp.eq.s32.totalorder %s20, 0
    %p209 = por %p207, %p208
    %p210 = scmp.ne.s32.totalorder %s198, %s199
    %p211 = scmp.eq.s32.totalorder %s21, 1
    %p212 = por %p210, %p211
    %p214 = scmp.ne.s32.totalorder %s199, %s213
    %p215 = scmp.eq.s32.totalorder %s21, 0
    %p216 = por %p214, %p215
    %s217 = ssub.s32 %s15, %s22
    %p218 = scmp.eq.s32.totalorder %s217, 0
    %s220 = sadd.s32 %s219, 1
    %s221 = scalar_select %p218, %s219, %s220
    %p224 = pneg %p218
    %p225 = scmp.eq.s32.totalorder %s15, 1
    %p226 = por %p224, %p225
    %p227 = scmp.ne.s32.totalorder %s219, %s222
    %p228 = scmp.eq.s32.totalorder %s15, 0
    %p229 = por %p227, %p228
    %p230 = scmp.ne.s32.totalorder %s219, %s222
    %p231 = scmp.eq.s32.totalorder %s20, 1
    %p232 = por %p230, %p231
    %p233 = scmp.ne.s32.totalorder %s222, %s223
    %p234 = scmp.eq.s32.totalorder %s20, 0
    %p235 = por %p233, %p234
    %p236 = scmp.ne.s32.totalorder %s222, %s223
    %p237 = scmp.eq.s32.totalorder %s21, 1
    %p238 = por %p236, %p237
    %p240 = scmp.ne.s32.totalorder %s223, %s239
    %p241 = scmp.eq.s32.totalorder %s21, 0
    %p242 = por %p240, %p241
    %p243 = scmp.le.s32.totalorder 1, %s15
    %p244 = scmp.lt.s32.totalorder %s15, 3
    %p245 = pnand %p243, %p244
    %p246 = pneg %p245
    // Predicated region
    $region9: #{spectral_attention_res_block.1} parent=5 // pred_check
      _
    $region10: #{spectral_attention_res_block.1} parent=5 // pred_check_branch
      %248 = sbr.rel (%p245) target = $region12
    $region11: #{spectral_attention_res_block.1} parent=5 // pred_region
      %s249 = ssub.s32 %s15, 1
      // Predicated region
      $region13: #{spectral_attention_res_block.1} parent=11 // pred_check
        %p250 = pneg %p62
      $region14: #{spectral_attention_res_block.1} parent=11 // pred_check_branch
        %252 = sbr.rel (%p250) target = $region16
      $region15: #{spectral_attention_res_block.1} parent=11 // pred_region
        _
      $region16: #{spectral_attention_res_block.1} parent=11 // pred_fallthru
        _
      // Predicated region
      $region17: #{spectral_attention_res_block.1} parent=11 // pred_check
        %p253 = pneg %p83
      $region18: #{spectral_attention_res_block.1} parent=11 // pred_check_branch
        %255 = sbr.rel (%p253) target = $region20
      $region19: #{spectral_attention_res_block.1} parent=11 // pred_region
        _
      $region20: #{spectral_attention_res_block.1} parent=11 // pred_fallthru
        _
      // Predicated region
      $region21: #{spectral_attention_res_block.1} parent=11 // pred_check
        %p256 = pneg %p104
      $region22: #{spectral_attention_res_block.1} parent=11 // pred_check_branch
        %258 = sbr.rel (%p256) target = $region24
      $region23: #{spectral_attention_res_block.1} parent=11 // pred_region
        _
      $region24: #{spectral_attention_res_block.1} parent=11 // pred_fallthru
        _
      // Predicated region
      $region25: #{spectral_attention_res_block.1} parent=11 // pred_check
        %p259 = pneg %p125
      $region26: #{spectral_attention_res_block.1} parent=11 // pred_check_branch
        %261 = sbr.rel (%p259) target = $region28
      $region27: #{spectral_attention_res_block.1} parent=11 // pred_region
        _
      $region28: #{spectral_attention_res_block.1} parent=11 // pred_fallthru
        _
      // Predicated region
      $region29: #{spectral_attention_res_block.1} parent=11 // pred_check
        %p262 = pneg %p146
      $region30: #{spectral_attention_res_block.1} parent=11 // pred_check_branch
        %264 = sbr.rel (%p262) target = $region32
      $region31: #{spectral_attention_res_block.1} parent=11 // pred_region
        _
      $region32: #{spectral_attention_res_block.1} parent=11 // pred_fallthru
        _
      // Predicated region
      $region33: #{spectral_attention_res_block.1} parent=11 // pred_check
        %p265 = pneg %p167
      $region34: #{spectral_attention_res_block.1} parent=11 // pred_check_branch
        %267 = sbr.rel (%p265) target = $region36
      $region35: #{spectral_attention_res_block.1} parent=11 // pred_region
        _
      $region36: #{spectral_attention_res_block.1} parent=11 // pred_fallthru
        _
      // Predicated region
      $region37: #{spectral_attention_res_block.1} parent=11 // pred_check
        %p268 = pneg %p188
      $region38: #{spectral_attention_res_block.1} parent=11 // pred_check_branch
        %270 = sbr.rel (%p268) target = $region40
      $region39: #{spectral_attention_res_block.1} parent=11 // pred_region
        _
      $region40: #{spectral_attention_res_block.1} parent=11 // pred_fallthru
        _
      // Predicated region
      $region41: #{spectral_attention_res_block.1} parent=11 // pred_check
        %p271 = pneg %p209
      $region42: #{spectral_attention_res_block.1} parent=11 // pred_check_branch
        %273 = sbr.rel (%p271) target = $region44
      $region43: #{spectral_attention_res_block.1} parent=11 // pred_region
        _
      $region44: #{spectral_attention_res_block.1} parent=11 // pred_fallthru
        _
    $region12: #{spectral_attention_res_block.1} parent=5 // pred_fallthru
      _
    %p274 = scmp.lt.s32.totalorder %s15, 2
    // Predicated region
    $region45: #{spectral_attention_res_block.1} parent=5 // pred_check
      %p275 = pneg %p274
    $region46: #{spectral_attention_res_block.1} parent=5 // pred_check_branch
      %277 = sbr.rel (%p275) target = $region48
    $region47: #{spectral_attention_res_block.1} parent=5 // pred_region
      // Predicated region
      $region49: #{spectral_attention_res_block.1} parent=47 // pred_check
        %p278 = pneg %p35
      $region50: #{spectral_attention_res_block.1} parent=47 // pred_check_branch
        %280 = sbr.rel (%p278) target = $region52
      $region51: #{spectral_attention_res_block.1} parent=47 // pred_region
        %p281 = scmp.lt.s32.totalorder %s15, 1
        %s282 = scalar_select %p281, %s15, 1
        %s283 = smul.addr %s282, 8
        %s284 = smul.addr %s283, 8
        %s285 = scalar_lea.vmem %s0, %s284
      $region52: #{spectral_attention_res_block.1} parent=47 // pred_fallthru
        _
    $region48: #{spectral_attention_res_block.1} parent=5 // pred_fallthru
      _
    %p286 = scmp.le.s32.totalorder 1, %s15
    %p287 = scmp.lt.s32.totalorder %s15, 3
    %p288 = pnand %p286, %p287
    %p289 = pneg %p288
    // Predicated region
    $region53: #{spectral_attention_res_block.1} parent=5 // pred_check
      _
    $region54: #{spectral_attention_res_block.1} parent=5 // pred_check_branch
      %291 = sbr.rel (%p288) target = $region56
    $region55: #{spectral_attention_res_block.1} parent=5 // pred_region
      %s292 = ssub.s32 %s15, 1
      %p293 = scmp.lt.s32.totalorder %s20, 1
      %s294 = scalar_select %p293, %s20, 1
      %s295 = smul.addr %s294, 8
      %s296 = smul.addr %s295, 8
      %s297 = scalar_lea.vmem %s0, %s296
      %p298 = pneg %p41
      %p299 = pneg %p38
      %p300 = pneg %p62
      %p301 = pneg %p59
      %p302 = pneg %p83
      %p303 = pneg %p80
      %p304 = pneg %p104
      %p305 = pneg %p101
      %p306 = pneg %p125
      %p307 = pneg %p122
      %p308 = pneg %p146
      %p309 = pneg %p143
      %p310 = pneg %p167
      %p311 = pneg %p164
      %p312 = pneg %p188
      %p313 = pneg %p185
      %p314 = pneg %p209
      %p315 = pneg %p206
      %p316 = pneg %p235
      %p317 = pneg %p232
      %p318 = scmp.lt.s32.totalorder %s20, 1
      %s319 = scalar_select %p318, %s20, 1
      %s320 = smul.addr %s319, 8
      %s321 = smul.addr %s320, 8
      %s322 = scalar_lea.vmem %s9, %s321
      %p323 = scmp.lt.s32.totalorder %s20, 1
      %s324 = scalar_select %p323, %s20, 1
      %s325 = smul.addr %s324, 8
      %s326 = smul.addr %s325, 8
      %s327 = scalar_lea.vmem %s0, %s326
      %p328 = scmp.lt.s32.totalorder %s20, 1
      %s329 = scalar_select %p328, %s20, 1
      %s330 = smul.addr %s329, 8
      %s331 = smul.addr %s330, 8
      %s332 = scalar_lea.vmem %s9, %s331
      %v333 = vld [vmem:[%s327] sm:$0xff]
      %v334 = vld [vmem:[%s327 + $0x8] sm:$0xff]
      %v335 = vld [vmem:[%s327 + $0x10] sm:$0xff]
      %v336 = vld [vmem:[%s327 + $0x18] sm:$0xff]
      %v337 = vld [vmem:[%s327 + $0x20] sm:$0xff]
      %v338 = vld [vmem:[%s327 + $0x28] sm:$0xff]
      %v339 = vld [vmem:[%s327 + $0x30] sm:$0xff]
      %v340 = vld [vmem:[%s327 + $0x38] sm:$0xff]
      %v341 = vlaneseq
      %v342 = vand.u32 %v341, 127
      %v343 = vadd.s32 %v342, 128
      %v344 = vand.u32 %v342, 15
      %v345 = vand.u32 %v343, 15
      %vm346 = vcmp.ge.s32.totalorder %v342, 16
      %vm347 = vcmp.ge.s32.totalorder %v343, 16
      %vm348 = vcmp.lt.s32.totalorder %v342, 240
      %vm349 = vcmp.lt.s32.totalorder %v343, 240
      %vm350 = vcmp.ge.s32.totalorder %v344, 1
      %vm351 = vcmp.ge.s32.totalorder %v345, 1
      %vm352 = vcmp.lt.s32.totalorder %v344, 15
      %vm353 = vcmp.lt.s32.totalorder %v345, 15
      %354 = vrot.lane.b32.xlu0 %v333, 17
      %v355 = vpop.permute.xlu0 %354
      %356 = vrot.lane.b32.xlu0 %v335, 17
      %v357 = vpop.permute.xlu0 %356
      %358 = vrot.lane.b32.xlu0 %v337, 17
      %v359 = vpop.permute.xlu0 %358
      %360 = vrot.lane.b32.xlu0 %v339, 17
      %v361 = vpop.permute.xlu0 %360
      %362 = vrot.lane.b32.xlu0 %v334, 17
      %v363 = vpop.permute.xlu0 %362
      %364 = vrot.lane.b32.xlu0 %v336, 17
      %v365 = vpop.permute.xlu0 %364
      %366 = vrot.lane.b32.xlu0 %v338, 17
      %v367 = vpop.permute.xlu0 %366
      %368 = vrot.lane.b32.xlu0 %v340, 17
      %v369 = vpop.permute.xlu0 %368
      %vm370 = vcmp.lt.s32.totalorder %v342, 17
      %v371 = vsel %vm370, %v355, %v363
      %v372 = vsel %vm370, %v357, %v365
      %v373 = vsel %vm370, %v359, %v367
      %v374 = vsel %vm370, %v361, %v369
      %v375 = vsel %vm370, %v363, %v355
      %v376 = vsel %vm370, %v365, %v357
      %v377 = vsel %vm370, %v367, %v359
      %v378 = vsel %vm370, %v369, %v361
      %vm379 = vmand %vm346, %vm350
      %vm380 = vmand %vm347, %vm351
      %v381 = vsel %vm379, 1, 0
      %v382 = vsel %vm380, 1, 0
      %vm383 = vcmp.eq.s32.totalorder %v381, 1
      %vm384 = vcmp.eq.s32.totalorder %v382, 1
      %v385 = vsel %vm383, %v375, 0.0
      %v386 = vsel %vm384, %v371, 0.0
      %v387 = vsel %vm383, %v376, 0.0
      %v388 = vsel %vm384, %v372, 0.0
      %v389 = vsel %vm383, %v377, 0.0
      %v390 = vsel %vm384, %v373, 0.0
      %v391 = vsel %vm383, %v378, 0.0
      %v392 = vsel %vm384, %v374, 0.0
      %v393 = vld [vmem:[%s1] sm:$0xff]
      %v394 = vld [vmem:[%s1 + $0x8] sm:$0xff]
      %v395 = vld [vmem:[%s1 + $0x10] sm:$0xff]
      %v396 = vld [vmem:[%s1 + $0x18] sm:$0xff]
      %397 = vrot.lane.b32.xlu0 %v333, 16
      %v398 = vpop.permute.xlu0 %397
      %399 = vrot.lane.b32.xlu0 %v335, 16
      %v400 = vpop.permute.xlu0 %399
      %401 = vrot.lane.b32.xlu0 %v337, 16
      %v402 = vpop.permute.xlu0 %401
      %403 = vrot.lane.b32.xlu0 %v339, 16
      %v404 = vpop.permute.xlu0 %403
      %405 = vrot.lane.b32.xlu0 %v334, 16
      %v406 = vpop.permute.xlu0 %405
      %407 = vrot.lane.b32.xlu0 %v336, 16
      %v408 = vpop.permute.xlu0 %407
      %409 = vrot.lane.b32.xlu0 %v338, 16
      %v410 = vpop.permute.xlu0 %409
      %411 = vrot.lane.b32.xlu0 %v340, 16
      %v412 = vpop.permute.xlu0 %411
      %vm413 = vcmp.lt.s32.totalorder %v342, 16
      %v414 = vsel %vm413, %v398, %v406
      %v415 = vsel %vm413, %v400, %v408
      %v416 = vsel %vm413, %v402, %v410
      %v417 = vsel %vm413, %v404, %v412
      %v418 = vsel %vm413, %v406, %v398
      %v419 = vsel %vm413, %v408, %v400
      %v420 = vsel %vm413, %v410, %v402
      %v421 = vsel %vm413, %v412, %v404
      %v422 = vsel %vm346, 1, 0
      %v423 = vsel %vm347, 1, 0
      %vm424 = vcmp.eq.s32.totalorder %v422, 1
      %vm425 = vcmp.eq.s32.totalorder %v423, 1
      %v426 = vsel %vm424, %v418, 0.0
      %v427 = vsel %vm425, %v414, 0.0
      %v428 = vsel %vm424, %v419, 0.0
      %v429 = vsel %vm425, %v415, 0.0
      %v430 = vsel %vm424, %v420, 0.0
      %v431 = vsel %vm425, %v416, 0.0
      %v432 = vsel %vm424, %v421, 0.0
      %v433 = vsel %vm425, %v417, 0.0
      %s434 = scalar_lea.vmem %s1, 32
      %v435 = vld [vmem:[%s434] sm:$0xff]
      %v436 = vld [vmem:[%s434 + $0x8] sm:$0xff]
      %v437 = vld [vmem:[%s434 + $0x10] sm:$0xff]
      %v438 = vld [vmem:[%s434 + $0x18] sm:$0xff]
      %vm439 = vcmask 261120
      %v441 = vsel %vm439, %v435, 0
      %v444 = vsel %vm439, %v436, 0
      %v447 = vsel %vm439, %v437, 0
      %v450 = vsel %vm439, %v438, 0
      %452 = vmatpush.msra.mxu0 0.0
      %453 = vmatpush.msra.mxu0 0.0
      %454 = vmatpush.msra.mxu0 0.0
      %455 = vmatpush.msra.mxu0 0.0
      %456 = vmatpush.msra.mxu0 0.0
      %457 = vmatpush.msra.mxu0 0.0
      %458 = vmatpush.msra.mxu0 0.0
      %459 = vmatpush.msra.mxu0 0.0
      %460 = vmatpush.msra.mxu0 0.0
      %461 = vmatpush.msra.mxu0 0.0
      %462 = vmatpush.msra.mxu0 0.0
      %463 = vmatpush.msra.mxu0 0.0
      %464 = vmatpush.msra.mxu0 %v432
      %465 = vmatpush.msra.mxu0 %v430
      %466 = vmatpush.msra.mxu0 %v428
      %467 = vmatpush.msra.mxu0 %v426
      %468 = vmatmul.f32.gmra.mxu0 %v441
      %v469 = vpop.f32.mrf.mxu0
      %v470 = vadd.f32 0.0, %v469
      %471 = vmatmul.f32.gmra.mxu0 %v444
      %v472 = vpop.f32.mrf.mxu0
      %v473 = vadd.f32 0.0, %v472
      %474 = vmatmul.f32.gmra.mxu0 %v447
      %v475 = vpop.f32.mrf.mxu0
      %v476 = vadd.f32 0.0, %v475
      %477 = vmatmul.f32.gmra.mxu0 %v450
      %v478 = vpop.f32.mrf.mxu0
      %v479 = vadd.f32 0.0, %v478
      %480 = vdwg.mxu0
      %481 = vmatpush.msra.mxu0 0.0
      %482 = vmatpush.msra.mxu0 0.0
      %483 = vmatpush.msra.mxu0 0.0
      %484 = vmatpush.msra.mxu0 0.0
      %485 = vmatpush.msra.mxu0 0.0
      %486 = vmatpush.msra.mxu0 0.0
      %487 = vmatpush.msra.mxu0 0.0
      %488 = vmatpush.msra.mxu0 0.0
      %489 = vmatpush.msra.mxu0 0.0
      %490 = vmatpush.msra.mxu0 0.0
      %491 = vmatpush.msra.mxu0 0.0
      %492 = vmatpush.msra.mxu0 0.0
      %493 = vmatpush.msra.mxu0 %v433
      %494 = vmatpush.msra.mxu0 %v431
      %495 = vmatpush.msra.mxu0 %v429
      %496 = vmatpush.msra.mxu0 %v427
      %497 = vmatmul.f32.gmra.mxu0 %v441
      %v498 = vpop.f32.mrf.mxu0
      %v499 = vadd.f32 0.0, %v498
      %500 = vmatmul.f32.gmra.mxu0 %v444
      %v501 = vpop.f32.mrf.mxu0
      %v502 = vadd.f32 0.0, %v501
      %503 = vmatmul.f32.gmra.mxu0 %v447
      %v504 = vpop.f32.mrf.mxu0
      %v505 = vadd.f32 0.0, %v504
      %506 = vmatmul.f32.gmra.mxu0 %v450
      %v507 = vpop.f32.mrf.mxu0
      %v508 = vadd.f32 0.0, %v507
      %509 = vdwg.mxu0
      %v511 = vsel %vm439, %v393, 0
      %v514 = vsel %vm439, %v394, 0
      %v517 = vsel %vm439, %v395, 0
      %v520 = vsel %vm439, %v396, 0
      %522 = vmatpush.msra.mxu0 0.0
      %523 = vmatpush.msra.mxu0 0.0
      %524 = vmatpush.msra.mxu0 0.0
      %525 = vmatpush.msra.mxu0 0.0
      %526 = vmatpush.msra.mxu0 0.0
      %527 = vmatpush.msra.mxu0 0.0
      %528 = vmatpush.msra.mxu0 0.0
      %529 = vmatpush.msra.mxu0 0.0
      %530 = vmatpush.msra.mxu0 0.0
      %531 = vmatpush.msra.mxu0 0.0
      %532 = vmatpush.msra.mxu0 0.0
      %533 = vmatpush.msra.mxu0 0.0
      %534 = vmatpush.msra.mxu0 %v391
      %535 = vmatpush.msra.mxu0 %v389
      %536 = vmatpush.msra.mxu0 %v387
      %537 = vmatpush.msra.mxu0 %v385
      %538 = vmatmul.f32.gmra.mxu0 %v511
      %v539 = vpop.f32.mrf.mxu0
      %v540 = vadd.f32 %v470, %v539
      %541 = vmatmul.f32.gmra.mxu0 %v514
      %v542 = vpop.f32.mrf.mxu0
      %v543 = vadd.f32 %v473, %v542
      %544 = vmatmul.f32.gmra.mxu0 %v517
      %v545 = vpop.f32.mrf.mxu0
      %v546 = vadd.f32 %v476, %v545
      %547 = vmatmul.f32.gmra.mxu0 %v520
      %v548 = vpop.f32.mrf.mxu0
      %v549 = vadd.f32 %v479, %v548
      %550 = vdwg.mxu0
      %551 = vmatpush.msra.mxu0 0.0
      %552 = vmatpush.msra.mxu0 0.0
      %553 = vmatpush.msra.mxu0 0.0
      %554 = vmatpush.msra.mxu0 0.0
      %555 = vmatpush.msra.mxu0 0.0
      %556 = vmatpush.msra.mxu0 0.0
      %557 = vmatpush.msra.mxu0 0.0
      %558 = vmatpush.msra.mxu0 0.0
      %559 = vmatpush.msra.mxu0 0.0
      %560 = vmatpush.msra.mxu0 0.0
      %561 = vmatpush.msra.mxu0 0.0
      %562 = vmatpush.msra.mxu0 0.0
      %563 = vmatpush.msra.mxu0 %v392
      %564 = vmatpush.msra.mxu0 %v390
      %565 = vmatpush.msra.mxu0 %v388
      %566 = vmatpush.msra.mxu0 %v386
      %567 = vmatmul.f32.gmra.mxu0 %v511
      %v568 = vpop.f32.mrf.mxu0
      %v569 = vadd.f32 %v499, %v568
      %570 = vmatmul.f32.gmra.mxu0 %v514
      %v571 = vpop.f32.mrf.mxu0
      %v572 = vadd.f32 %v502, %v571
      %573 = vmatmul.f32.gmra.mxu0 %v517
      %v574 = vpop.f32.mrf.mxu0
      %v575 = vadd.f32 %v505, %v574
      %576 = vmatmul.f32.gmra.mxu0 %v520
      %v577 = vpop.f32.mrf.mxu0
      %v578 = vadd.f32 %v508, %v577
      %579 = vdwg.mxu0
      %580 = vrot.lane.b32.xlu0 %v333, 15
      %v581 = vpop.permute.xlu0 %580
      %582 = vrot.lane.b32.xlu0 %v335, 15
      %v583 = vpop.permute.xlu0 %582
      %584 = vrot.lane.b32.xlu0 %v337, 15
      %v585 = vpop.permute.xlu0 %584
      %586 = vrot.lane.b32.xlu0 %v339, 15
      %v587 = vpop.permute.xlu0 %586
      %588 = vrot.lane.b32.xlu0 %v334, 15
      %v589 = vpop.permute.xlu0 %588
      %590 = vrot.lane.b32.xlu0 %v336, 15
      %v591 = vpop.permute.xlu0 %590
      %592 = vrot.lane.b32.xlu0 %v338, 15
      %v593 = vpop.permute.xlu0 %592
      %594 = vrot.lane.b32.xlu0 %v340, 15
      %v595 = vpop.permute.xlu0 %594
      %vm596 = vcmp.lt.s32.totalorder %v342, 15
      %v597 = vsel %vm596, %v581, %v589
      %v598 = vsel %vm596, %v583, %v591
      %v599 = vsel %vm596, %v585, %v593
      %v600 = vsel %vm596, %v587, %v595
      %v601 = vsel %vm596, %v589, %v581
      %v602 = vsel %vm596, %v591, %v583
      %v603 = vsel %vm596, %v593, %v585
      %v604 = vsel %vm596, %v595, %v587
      %vm605 = vmand %vm346, %vm352
      %vm606 = vmand %vm347, %vm353
      %v607 = vsel %vm605, 1, 0
      %v608 = vsel %vm606, 1, 0
      %vm609 = vcmp.eq.s32.totalorder %v607, 1
      %vm610 = vcmp.eq.s32.totalorder %v608, 1
      %v611 = vsel %vm609, %v601, 0.0
      %v612 = vsel %vm610, %v597, 0.0
      %v613 = vsel %vm609, %v602, 0.0
      %v614 = vsel %vm610, %v598, 0.0
      %v615 = vsel %vm609, %v603, 0.0
      %v616 = vsel %vm610, %v599, 0.0
      %v617 = vsel %vm609, %v604, 0.0
      %v618 = vsel %vm610, %v600, 0.0
      %s619 = scalar_lea.vmem %s1, 64
      %v620 = vld [vmem:[%s619] sm:$0xff]
      %v621 = vld [vmem:[%s619 + $0x8] sm:$0xff]
      %v622 = vld [vmem:[%s619 + $0x10] sm:$0xff]
      %v623 = vld [vmem:[%s619 + $0x18] sm:$0xff]
      %v625 = vsel %vm439, %v620, 0
      %v628 = vsel %vm439, %v621, 0
      %v631 = vsel %vm439, %v622, 0
      %v634 = vsel %vm439, %v623, 0
      %636 = vmatpush.msra.mxu0 0.0
      %637 = vmatpush.msra.mxu0 0.0
      %638 = vmatpush.msra.mxu0 0.0
      %639 = vmatpush.msra.mxu0 0.0
      %640 = vmatpush.msra.mxu0 0.0
      %641 = vmatpush.msra.mxu0 0.0
      %642 = vmatpush.msra.mxu0 0.0
      %643 = vmatpush.msra.mxu0 0.0
      %644 = vmatpush.msra.mxu0 0.0
      %645 = vmatpush.msra.mxu0 0.0
      %646 = vmatpush.msra.mxu0 0.0
      %647 = vmatpush.msra.mxu0 0.0
      %648 = vmatpush.msra.mxu0 %v617
      %649 = vmatpush.msra.mxu0 %v615
      %650 = vmatpush.msra.mxu0 %v613
      %651 = vmatpush.msra.mxu0 %v611
      %652 = vmatmul.f32.gmra.mxu0 %v625
      %v653 = vpop.f32.mrf.mxu0
      %v654 = vadd.f32 0.0, %v653
      %655 = vmatmul.f32.gmra.mxu0 %v628
      %v656 = vpop.f32.mrf.mxu0
      %v657 = vadd.f32 0.0, %v656
      %658 = vmatmul.f32.gmra.mxu0 %v631
      %v659 = vpop.f32.mrf.mxu0
      %v660 = vadd.f32 0.0, %v659
      %661 = vmatmul.f32.gmra.mxu0 %v634
      %v662 = vpop.f32.mrf.mxu0
      %v663 = vadd.f32 0.0, %v662
      %664 = vdwg.mxu0
      %665 = vmatpush.msra.mxu0 0.0
      %666 = vmatpush.msra.mxu0 0.0
      %667 = vmatpush.msra.mxu0 0.0
      %668 = vmatpush.msra.mxu0 0.0
      %669 = vmatpush.msra.mxu0 0.0
      %670 = vmatpush.msra.mxu0 0.0
      %671 = vmatpush.msra.mxu0 0.0
      %672 = vmatpush.msra.mxu0 0.0
      %673 = vmatpush.msra.mxu0 0.0
      %674 = vmatpush.msra.mxu0 0.0
      %675 = vmatpush.msra.mxu0 0.0
      %676 = vmatpush.msra.mxu0 0.0
      %677 = vmatpush.msra.mxu0 %v618
      %678 = vmatpush.msra.mxu0 %v616
      %679 = vmatpush.msra.mxu0 %v614
      %680 = vmatpush.msra.mxu0 %v612
      %681 = vmatmul.f32.gmra.mxu0 %v625
      %v682 = vpop.f32.mrf.mxu0
      %v683 = vadd.f32 0.0, %v682
      %684 = vmatmul.f32.gmra.mxu0 %v628
      %v685 = vpop.f32.mrf.mxu0
      %v686 = vadd.f32 0.0, %v685
      %687 = vmatmul.f32.gmra.mxu0 %v631
      %v688 = vpop.f32.mrf.mxu0
      %v689 = vadd.f32 0.0, %v688
      %690 = vmatmul.f32.gmra.mxu0 %v634
      %v691 = vpop.f32.mrf.mxu0
      %v692 = vadd.f32 0.0, %v691
      %693 = vdwg.mxu0
      %v694 = vadd.f32 %v540, %v654
      %v695 = vadd.f32 %v569, %v683
      %v696 = vadd.f32 %v543, %v657
      %v697 = vadd.f32 %v572, %v686
      %v698 = vadd.f32 %v546, %v660
      %v699 = vadd.f32 %v575, %v689
      %v700 = vadd.f32 %v549, %v663
      %v701 = vadd.f32 %v578, %v692
      %702 = vrot.lane.b32.xlu0 %v333, 1
      %v703 = vpop.permute.xlu0 %702
      %704 = vrot.lane.b32.xlu0 %v335, 1
      %v705 = vpop.permute.xlu0 %704
      %706 = vrot.lane.b32.xlu0 %v337, 1
      %v707 = vpop.permute.xlu0 %706
      %708 = vrot.lane.b32.xlu0 %v339, 1
      %v709 = vpop.permute.xlu0 %708
      %710 = vrot.lane.b32.xlu0 %v334, 1
      %v711 = vpop.permute.xlu0 %710
      %712 = vrot.lane.b32.xlu0 %v336, 1
      %v713 = vpop.permute.xlu0 %712
      %714 = vrot.lane.b32.xlu0 %v338, 1
      %v715 = vpop.permute.xlu0 %714
      %716 = vrot.lane.b32.xlu0 %v340, 1
      %v717 = vpop.permute.xlu0 %716
      %vm718 = vcmp.lt.s32.totalorder %v342, 1
      %v719 = vsel %vm718, %v703, %v711
      %v720 = vsel %vm718, %v705, %v713
      %v721 = vsel %vm718, %v707, %v715
      %v722 = vsel %vm718, %v709, %v717
      %v723 = vsel %vm718, %v711, %v703
      %v724 = vsel %vm718, %v713, %v705
      %v725 = vsel %vm718, %v715, %v707
      %v726 = vsel %vm718, %v717, %v709
      %v727 = vsel %vm350, 1, 0
      %v728 = vsel %vm351, 1, 0
      %vm729 = vcmp.eq.s32.totalorder %v727, 1
      %vm730 = vcmp.eq.s32.totalorder %v728, 1
      %v731 = vsel %vm729, %v723, 0.0
      %v732 = vsel %vm730, %v719, 0.0
      %v733 = vsel %vm729, %v724, 0.0
      %v734 = vsel %vm730, %v720, 0.0
      %v735 = vsel %vm729, %v725, 0.0
      %v736 = vsel %vm730, %v721, 0.0
      %v737 = vsel %vm729, %v726, 0.0
      %v738 = vsel %vm730, %v722, 0.0
      %s739 = scalar_lea.vmem %s1, 96
      %v740 = vld [vmem:[%s739] sm:$0xff]
      %v741 = vld [vmem:[%s739 + $0x8] sm:$0xff]
      %v742 = vld [vmem:[%s739 + $0x10] sm:$0xff]
      %v743 = vld [vmem:[%s739 + $0x18] sm:$0xff]
      %v745 = vsel %vm439, %v740, 0
      %v748 = vsel %vm439, %v741, 0
      %v751 = vsel %vm439, %v742, 0
      %v754 = vsel %vm439, %v743, 0
      %756 = vmatpush.msra.mxu0 0.0
      %757 = vmatpush.msra.mxu0 0.0
      %758 = vmatpush.msra.mxu0 0.0
      %759 = vmatpush.msra.mxu0 0.0
      %760 = vmatpush.msra.mxu0 0.0
      %761 = vmatpush.msra.mxu0 0.0
      %762 = vmatpush.msra.mxu0 0.0
      %763 = vmatpush.msra.mxu0 0.0
      %764 = vmatpush.msra.mxu0 0.0
      %765 = vmatpush.msra.mxu0 0.0
      %766 = vmatpush.msra.mxu0 0.0
      %767 = vmatpush.msra.mxu0 0.0
      %768 = vmatpush.msra.mxu0 %v737
      %769 = vmatpush.msra.mxu0 %v735
      %770 = vmatpush.msra.mxu0 %v733
      %771 = vmatpush.msra.mxu0 %v731
      %772 = vmatmul.f32.gmra.mxu0 %v745
      %v773 = vpop.f32.mrf.mxu0
      %v774 = vadd.f32 0.0, %v773
      %775 = vmatmul.f32.gmra.mxu0 %v748
      %v776 = vpop.f32.mrf.mxu0
      %v777 = vadd.f32 0.0, %v776
      %778 = vmatmul.f32.gmra.mxu0 %v751
      %v779 = vpop.f32.mrf.mxu0
      %v780 = vadd.f32 0.0, %v779
      %781 = vmatmul.f32.gmra.mxu0 %v754
      %v782 = vpop.f32.mrf.mxu0
      %v783 = vadd.f32 0.0, %v782
      %784 = vdwg.mxu0
      %785 = vmatpush.msra.mxu0 0.0
      %786 = vmatpush.msra.mxu0 0.0
      %787 = vmatpush.msra.mxu0 0.0
      %788 = vmatpush.msra.mxu0 0.0
      %789 = vmatpush.msra.mxu0 0.0
      %790 = vmatpush.msra.mxu0 0.0
      %791 = vmatpush.msra.mxu0 0.0
      %792 = vmatpush.msra.mxu0 0.0
      %793 = vmatpush.msra.mxu0 0.0
      %794 = vmatpush.msra.mxu0 0.0
      %795 = vmatpush.msra.mxu0 0.0
      %796 = vmatpush.msra.mxu0 0.0
      %797 = vmatpush.msra.mxu0 %v738
      %798 = vmatpush.msra.mxu0 %v736
      %799 = vmatpush.msra.mxu0 %v734
      %800 = vmatpush.msra.mxu0 %v732
      %801 = vmatmul.f32.gmra.mxu0 %v745
      %v802 = vpop.f32.mrf.mxu0
      %v803 = vadd.f32 0.0, %v802
      %804 = vmatmul.f32.gmra.mxu0 %v748
      %v805 = vpop.f32.mrf.mxu0
      %v806 = vadd.f32 0.0, %v805
      %807 = vmatmul.f32.gmra.mxu0 %v751
      %v808 = vpop.f32.mrf.mxu0
      %v809 = vadd.f32 0.0, %v808
      %810 = vmatmul.f32.gmra.mxu0 %v754
      %v811 = vpop.f32.mrf.mxu0
      %v812 = vadd.f32 0.0, %v811
      %813 = vdwg.mxu0
      %v814 = vadd.f32 %v694, %v774
      %v815 = vadd.f32 %v695, %v803
      %v816 = vadd.f32 %v696, %v777
      %v817 = vadd.f32 %v697, %v806
      %v818 = vadd.f32 %v698, %v780
      %v819 = vadd.f32 %v699, %v809
      %v820 = vadd.f32 %v700, %v783
      %v821 = vadd.f32 %v701, %v812
      %s822 = scalar_lea.vmem %s1, 128
      %v823 = vld [vmem:[%s822] sm:$0xff]
      %v824 = vld [vmem:[%s822 + $0x8] sm:$0xff]
      %v825 = vld [vmem:[%s822 + $0x10] sm:$0xff]
      %v826 = vld [vmem:[%s822 + $0x18] sm:$0xff]
      %v828 = vsel %vm439, %v823, 0
      %v831 = vsel %vm439, %v824, 0
      %v834 = vsel %vm439, %v825, 0
      %v837 = vsel %vm439, %v826, 0
      %839 = vmatpush.msra.mxu0 0.0
      %840 = vmatpush.msra.mxu0 0.0
      %841 = vmatpush.msra.mxu0 0.0
      %842 = vmatpush.msra.mxu0 0.0
      %843 = vmatpush.msra.mxu0 0.0
      %844 = vmatpush.msra.mxu0 0.0
      %845 = vmatpush.msra.mxu0 0.0
      %846 = vmatpush.msra.mxu0 0.0
      %847 = vmatpush.msra.mxu0 0.0
      %848 = vmatpush.msra.mxu0 0.0
      %849 = vmatpush.msra.mxu0 0.0
      %850 = vmatpush.msra.mxu0 0.0
      %851 = vmatpush.msra.mxu0 %v339
      %852 = vmatpush.msra.mxu0 %v337
      %853 = vmatpush.msra.mxu0 %v335
      %854 = vmatpush.msra.mxu0 %v333
      %855 = vmatmul.f32.gmra.mxu0 %v828
      %v856 = vpop.f32.mrf.mxu0
      %v857 = vadd.f32 0.0, %v856
      %858 = vmatmul.f32.gmra.mxu0 %v831
      %v859 = vpop.f32.mrf.mxu0
      %v860 = vadd.f32 0.0, %v859
      %861 = vmatmul.f32.gmra.mxu0 %v834
      %v862 = vpop.f32.mrf.mxu0
      %v863 = vadd.f32 0.0, %v862
      %864 = vmatmul.f32.gmra.mxu0 %v837
      %v865 = vpop.f32.mrf.mxu0
      %v866 = vadd.f32 0.0, %v865
      %867 = vdwg.mxu0
      %868 = vmatpush.msra.mxu0 0.0
      %869 = vmatpush.msra.mxu0 0.0
      %870 = vmatpush.msra.mxu0 0.0
      %871 = vmatpush.msra.mxu0 0.0
      %872 = vmatpush.msra.mxu0 0.0
      %873 = vmatpush.msra.mxu0 0.0
      %874 = vmatpush.msra.mxu0 0.0
      %875 = vmatpush.msra.mxu0 0.0
      %876 = vmatpush.msra.mxu0 0.0
      %877 = vmatpush.msra.mxu0 0.0
      %878 = vmatpush.msra.mxu0 0.0
      %879 = vmatpush.msra.mxu0 0.0
      %880 = vmatpush.msra.mxu0 %v340
      %881 = vmatpush.msra.mxu0 %v338
      %882 = vmatpush.msra.mxu0 %v336
      %883 = vmatpush.msra.mxu0 %v334
      %884 = vmatmul.f32.gmra.mxu0 %v828
      %v885 = vpop.f32.mrf.mxu0
      %v886 = vadd.f32 0.0, %v885
      %887 = vmatmul.f32.gmra.mxu0 %v831
      %v888 = vpop.f32.mrf.mxu0
      %v889 = vadd.f32 0.0, %v888
      %890 = vmatmul.f32.gmra.mxu0 %v834
      %v891 = vpop.f32.mrf.mxu0
      %v892 = vadd.f32 0.0, %v891
      %893 = vmatmul.f32.gmra.mxu0 %v837
      %v894 = vpop.f32.mrf.mxu0
      %v895 = vadd.f32 0.0, %v894
      %896 = vdwg.mxu0
      %v897 = vadd.f32 %v814, %v857
      %v898 = vadd.f32 %v815, %v886
      %v899 = vadd.f32 %v816, %v860
      %v900 = vadd.f32 %v817, %v889
      %v901 = vadd.f32 %v818, %v863
      %v902 = vadd.f32 %v819, %v892
      %v903 = vadd.f32 %v820, %v866
      %v904 = vadd.f32 %v821, %v895
      %905 = vrot.lane.b32.xlu0 %v333, 127
      %v906 = vpop.permute.xlu0 %905
      %907 = vrot.lane.b32.xlu0 %v335, 127
      %v908 = vpop.permute.xlu0 %907
      %909 = vrot.lane.b32.xlu0 %v337, 127
      %v910 = vpop.permute.xlu0 %909
      %911 = vrot.lane.b32.xlu0 %v339, 127
      %v912 = vpop.permute.xlu0 %911
      %913 = vrot.lane.b32.xlu0 %v334, 127
      %v914 = vpop.permute.xlu0 %913
      %915 = vrot.lane.b32.xlu0 %v336, 127
      %v916 = vpop.permute.xlu0 %915
      %917 = vrot.lane.b32.xlu0 %v338, 127
      %v918 = vpop.permute.xlu0 %917
      %919 = vrot.lane.b32.xlu0 %v340, 127
      %v920 = vpop.permute.xlu0 %919
      %vm921 = vcmp.lt.s32.totalorder %v342, 127
      %v922 = vsel %vm921, %v906, %v914
      %v923 = vsel %vm921, %v908, %v916
      %v924 = vsel %vm921, %v910, %v918
      %v925 = vsel %vm921, %v912, %v920
      %v926 = vsel %vm921, %v914, %v906
      %v927 = vsel %vm921, %v916, %v908
      %v928 = vsel %vm921, %v918, %v910
      %v929 = vsel %vm921, %v920, %v912
      %v930 = vsel %vm352, 1, 0
      %v931 = vsel %vm353, 1, 0
      %vm932 = vcmp.eq.s32.totalorder %v930, 1
      %vm933 = vcmp.eq.s32.totalorder %v931, 1
      %v934 = vsel %vm932, %v922, 0.0
      %v935 = vsel %vm933, %v926, 0.0
      %v936 = vsel %vm932, %v923, 0.0
      %v937 = vsel %vm933, %v927, 0.0
      %v938 = vsel %vm932, %v924, 0.0
      %v939 = vsel %vm933, %v928, 0.0
      %v940 = vsel %vm932, %v925, 0.0
      %v941 = vsel %vm933, %v929, 0.0
      %s942 = scalar_lea.vmem %s1, 160
      %v943 = vld [vmem:[%s942] sm:$0xff]
      %v944 = vld [vmem:[%s942 + $0x8] sm:$0xff]
      %v945 = vld [vmem:[%s942 + $0x10] sm:$0xff]
      %v946 = vld [vmem:[%s942 + $0x18] sm:$0xff]
      %v948 = vsel %vm439, %v943, 0
      %v951 = vsel %vm439, %v944, 0
      %v954 = vsel %vm439, %v945, 0
      %v957 = vsel %vm439, %v946, 0
      %959 = vmatpush.msra.mxu0 0.0
      %960 = vmatpush.msra.mxu0 0.0
      %961 = vmatpush.msra.mxu0 0.0
      %962 = vmatpush.msra.mxu0 0.0
      %963 = vmatpush.msra.mxu0 0.0
      %964 = vmatpush.msra.mxu0 0.0
      %965 = vmatpush.msra.mxu0 0.0
      %966 = vmatpush.msra.mxu0 0.0
      %967 = vmatpush.msra.mxu0 0.0
      %968 = vmatpush.msra.mxu0 0.0
      %969 = vmatpush.msra.mxu0 0.0
      %970 = vmatpush.msra.mxu0 0.0
      %971 = vmatpush.msra.mxu0 %v940
      %972 = vmatpush.msra.mxu0 %v938
      %973 = vmatpush.msra.mxu0 %v936
      %974 = vmatpush.msra.mxu0 %v934
      %975 = vmatmul.f32.gmra.mxu0 %v948
      %v976 = vpop.f32.mrf.mxu0
      %v977 = vadd.f32 0.0, %v976
      %978 = vmatmul.f32.gmra.mxu0 %v951
      %v979 = vpop.f32.mrf.mxu0
      %v980 = vadd.f32 0.0, %v979
      %981 = vmatmul.f32.gmra.mxu0 %v954
      %v982 = vpop.f32.mrf.mxu0
      %v983 = vadd.f32 0.0, %v982
      %984 = vmatmul.f32.gmra.mxu0 %v957
      %v985 = vpop.f32.mrf.mxu0
      %v986 = vadd.f32 0.0, %v985
      %987 = vdwg.mxu0
      %988 = vmatpush.msra.mxu0 0.0
      %989 = vmatpush.msra.mxu0 0.0
      %990 = vmatpush.msra.mxu0 0.0
      %991 = vmatpush.msra.mxu0 0.0
      %992 = vmatpush.msra.mxu0 0.0
      %993 = vmatpush.msra.mxu0 0.0
      %994 = vmatpush.msra.mxu0 0.0
      %995 = vmatpush.msra.mxu0 0.0
      %996 = vmatpush.msra.mxu0 0.0
      %997 = vmatpush.msra.mxu0 0.0
      %998 = vmatpush.msra.mxu0 0.0
      %999 = vmatpush.msra.mxu0 0.0
      %1000 = vmatpush.msra.mxu0 %v941
      %1001 = vmatpush.msra.mxu0 %v939
      %1002 = vmatpush.msra.mxu0 %v937
      %1003 = vmatpush.msra.mxu0 %v935
      %1004 = vmatmul.f32.gmra.mxu0 %v948
      %v1005 = vpop.f32.mrf.mxu0
      %v1006 = vadd.f32 0.0, %v1005
      %1007 = vmatmul.f32.gmra.mxu0 %v951
      %v1008 = vpop.f32.mrf.mxu0
      %v1009 = vadd.f32 0.0, %v1008
      %1010 = vmatmul.f32.gmra.mxu0 %v954
      %v1011 = vpop.f32.mrf.mxu0
      %v1012 = vadd.f32 0.0, %v1011
      %1013 = vmatmul.f32.gmra.mxu0 %v957
      %v1014 = vpop.f32.mrf.mxu0
      %v1015 = vadd.f32 0.0, %v1014
      %1016 = vdwg.mxu0
      %v1017 = vadd.f32 %v897, %v977
      %v1018 = vadd.f32 %v898, %v1006
      %v1019 = vadd.f32 %v899, %v980
      %v1020 = vadd.f32 %v900, %v1009
      %v1021 = vadd.f32 %v901, %v983
      %v1022 = vadd.f32 %v902, %v1012
      %v1023 = vadd.f32 %v903, %v986
      %v1024 = vadd.f32 %v904, %v1015
      %1025 = vrot.lane.b32.xlu0 %v333, 113
      %v1026 = vpop.permute.xlu0 %1025
      %1027 = vrot.lane.b32.xlu0 %v335, 113
      %v1028 = vpop.permute.xlu0 %1027
      %1029 = vrot.lane.b32.xlu0 %v337, 113
      %v1030 = vpop.permute.xlu0 %1029
      %1031 = vrot.lane.b32.xlu0 %v339, 113
      %v1032 = vpop.permute.xlu0 %1031
      %1033 = vrot.lane.b32.xlu0 %v334, 113
      %v1034 = vpop.permute.xlu0 %1033
      %1035 = vrot.lane.b32.xlu0 %v336, 113
      %v1036 = vpop.permute.xlu0 %1035
      %1037 = vrot.lane.b32.xlu0 %v338, 113
      %v1038 = vpop.permute.xlu0 %1037
      %1039 = vrot.lane.b32.xlu0 %v340, 113
      %v1040 = vpop.permute.xlu0 %1039
      %vm1041 = vcmp.lt.s32.totalorder %v342, 113
      %v1042 = vsel %vm1041, %v1026, %v1034
      %v1043 = vsel %vm1041, %v1028, %v1036
      %v1044 = vsel %vm1041, %v1030, %v1038
      %v1045 = vsel %vm1041, %v1032, %v1040
      %v1046 = vsel %vm1041, %v1034, %v1026
      %v1047 = vsel %vm1041, %v1036, %v1028
      %v1048 = vsel %vm1041, %v1038, %v1030
      %v1049 = vsel %vm1041, %v1040, %v1032
      %vm1050 = vmand %vm348, %vm350
      %vm1051 = vmand %vm349, %vm351
      %v1052 = vsel %vm1050, 1, 0
      %v1053 = vsel %vm1051, 1, 0
      %vm1054 = vcmp.eq.s32.totalorder %v1052, 1
      %vm1055 = vcmp.eq.s32.totalorder %v1053, 1
      %v1056 = vsel %vm1054, %v1042, 0.0
      %v1057 = vsel %vm1055, %v1046, 0.0
      %v1058 = vsel %vm1054, %v1043, 0.0
      %v1059 = vsel %vm1055, %v1047, 0.0
      %v1060 = vsel %vm1054, %v1044, 0.0
      %v1061 = vsel %vm1055, %v1048, 0.0
      %v1062 = vsel %vm1054, %v1045, 0.0
      %v1063 = vsel %vm1055, %v1049, 0.0
      %s1064 = scalar_lea.vmem %s1, 192
      %v1065 = vld [vmem:[%s1064] sm:$0xff]
      %v1066 = vld [vmem:[%s1064 + $0x8] sm:$0xff]
      %v1067 = vld [vmem:[%s1064 + $0x10] sm:$0xff]
      %v1068 = vld [vmem:[%s1064 + $0x18] sm:$0xff]
      %v1070 = vsel %vm439, %v1065, 0
      %v1073 = vsel %vm439, %v1066, 0
      %v1076 = vsel %vm439, %v1067, 0
      %v1079 = vsel %vm439, %v1068, 0
      %1081 = vmatpush.msra.mxu0 0.0
      %1082 = vmatpush.msra.mxu0 0.0
      %1083 = vmatpush.msra.mxu0 0.0
      %1084 = vmatpush.msra.mxu0 0.0
      %1085 = vmatpush.msra.mxu0 0.0
      %1086 = vmatpush.msra.mxu0 0.0
      %1087 = vmatpush.msra.mxu0 0.0
      %1088 = vmatpush.msra.mxu0 0.0
      %1089 = vmatpush.msra.mxu0 0.0
      %1090 = vmatpush.msra.mxu0 0.0
      %1091 = vmatpush.msra.mxu0 0.0
      %1092 = vmatpush.msra.mxu0 0.0
      %1093 = vmatpush.msra.mxu0 %v1062
      %1094 = vmatpush.msra.mxu0 %v1060
      %1095 = vmatpush.msra.mxu0 %v1058
      %1096 = vmatpush.msra.mxu0 %v1056
      %1097 = vmatmul.f32.gmra.mxu0 %v1070
      %v1098 = vpop.f32.mrf.mxu0
      %v1099 = vadd.f32 0.0, %v1098
      %1100 = vmatmul.f32.gmra.mxu0 %v1073
      %v1101 = vpop.f32.mrf.mxu0
      %v1102 = vadd.f32 0.0, %v1101
      %1103 = vmatmul.f32.gmra.mxu0 %v1076
      %v1104 = vpop.f32.mrf.mxu0
      %v1105 = vadd.f32 0.0, %v1104
      %1106 = vmatmul.f32.gmra.mxu0 %v1079
      %v1107 = vpop.f32.mrf.mxu0
      %v1108 = vadd.f32 0.0, %v1107
      %1109 = vdwg.mxu0
      %1110 = vmatpush.msra.mxu0 0.0
      %1111 = vmatpush.msra.mxu0 0.0
      %1112 = vmatpush.msra.mxu0 0.0
      %1113 = vmatpush.msra.mxu0 0.0
      %1114 = vmatpush.msra.mxu0 0.0
      %1115 = vmatpush.msra.mxu0 0.0
      %1116 = vmatpush.msra.mxu0 0.0
      %1117 = vmatpush.msra.mxu0 0.0
      %1118 = vmatpush.msra.mxu0 0.0
      %1119 = vmatpush.msra.mxu0 0.0
      %1120 = vmatpush.msra.mxu0 0.0
      %1121 = vmatpush.msra.mxu0 0.0
      %1122 = vmatpush.msra.mxu0 %v1063
      %1123 = vmatpush.msra.mxu0 %v1061
      %1124 = vmatpush.msra.mxu0 %v1059
      %1125 = vmatpush.msra.mxu0 %v1057
      %1126 = vmatmul.f32.gmra.mxu0 %v1070
      %v1127 = vpop.f32.mrf.mxu0
      %v1128 = vadd.f32 0.0, %v1127
      %1129 = vmatmul.f32.gmra.mxu0 %v1073
      %v1130 = vpop.f32.mrf.mxu0
      %v1131 = vadd.f32 0.0, %v1130
      %1132 = vmatmul.f32.gmra.mxu0 %v1076
      %v1133 = vpop.f32.mrf.mxu0
      %v1134 = vadd.f32 0.0, %v1133
      %1135 = vmatmul.f32.gmra.mxu0 %v1079
      %v1136 = vpop.f32.mrf.mxu0
      %v1137 = vadd.f32 0.0, %v1136
      %1138 = vdwg.mxu0
      %v1139 = vadd.f32 %v1017, %v1099
      %v1140 = vadd.f32 %v1018, %v1128
      %v1141 = vadd.f32 %v1019, %v1102
      %v1142 = vadd.f32 %v1020, %v1131
      %v1143 = vadd.f32 %v1021, %v1105
      %v1144 = vadd.f32 %v1022, %v1134
      %v1145 = vadd.f32 %v1023, %v1108
      %v1146 = vadd.f32 %v1024, %v1137
      %1147 = vrot.lane.b32.xlu0 %v333, 112
      %v1148 = vpop.permute.xlu0 %1147
      %1149 = vrot.lane.b32.xlu0 %v335, 112
      %v1150 = vpop.permute.xlu0 %1149
      %1151 = vrot.lane.b32.xlu0 %v337, 112
      %v1152 = vpop.permute.xlu0 %1151
      %1153 = vrot.lane.b32.xlu0 %v339, 112
      %v1154 = vpop.permute.xlu0 %1153
      %1155 = vrot.lane.b32.xlu0 %v334, 112
      %v1156 = vpop.permute.xlu0 %1155
      %1157 = vrot.lane.b32.xlu0 %v336, 112
      %v1158 = vpop.permute.xlu0 %1157
      %1159 = vrot.lane.b32.xlu0 %v338, 112
      %v1160 = vpop.permute.xlu0 %1159
      %1161 = vrot.lane.b32.xlu0 %v340, 112
      %v1162 = vpop.permute.xlu0 %1161
      %vm1163 = vcmp.lt.s32.totalorder %v342, 112
      %v1164 = vsel %vm1163, %v1148, %v1156
      %v1165 = vsel %vm1163, %v1150, %v1158
      %v1166 = vsel %vm1163, %v1152, %v1160
      %v1167 = vsel %vm1163, %v1154, %v1162
      %v1168 = vsel %vm1163, %v1156, %v1148
      %v1169 = vsel %vm1163, %v1158, %v1150
      %v1170 = vsel %vm1163, %v1160, %v1152
      %v1171 = vsel %vm1163, %v1162, %v1154
      %v1172 = vsel %vm348, 1, 0
      %v1173 = vsel %vm349, 1, 0
      %vm1174 = vcmp.eq.s32.totalorder %v1172, 1
      %vm1175 = vcmp.eq.s32.totalorder %v1173, 1
      %v1176 = vsel %vm1174, %v1164, 0.0
      %v1177 = vsel %vm1175, %v1168, 0.0
      %v1178 = vsel %vm1174, %v1165, 0.0
      %v1179 = vsel %vm1175, %v1169, 0.0
      %v1180 = vsel %vm1174, %v1166, 0.0
      %v1181 = vsel %vm1175, %v1170, 0.0
      %v1182 = vsel %vm1174, %v1167, 0.0
      %v1183 = vsel %vm1175, %v1171, 0.0
      %s1184 = scalar_lea.vmem %s1, 224
      %v1185 = vld [vmem:[%s1184] sm:$0xff]
      %v1186 = vld [vmem:[%s1184 + $0x8] sm:$0xff]
      %v1187 = vld [vmem:[%s1184 + $0x10] sm:$0xff]
      %v1188 = vld [vmem:[%s1184 + $0x18] sm:$0xff]
      %v1190 = vsel %vm439, %v1185, 0
      %v1193 = vsel %vm439, %v1186, 0
      %v1196 = vsel %vm439, %v1187, 0
      %v1199 = vsel %vm439, %v1188, 0
      %1201 = vmatpush.msra.mxu0 0.0
      %1202 = vmatpush.msra.mxu0 0.0
      %1203 = vmatpush.msra.mxu0 0.0
      %1204 = vmatpush.msra.mxu0 0.0
      %1205 = vmatpush.msra.mxu0 0.0
      %1206 = vmatpush.msra.mxu0 0.0
      %1207 = vmatpush.msra.mxu0 0.0
      %1208 = vmatpush.msra.mxu0 0.0
      %1209 = vmatpush.msra.mxu0 0.0
      %1210 = vmatpush.msra.mxu0 0.0
      %1211 = vmatpush.msra.mxu0 0.0
      %1212 = vmatpush.msra.mxu0 0.0
      %1213 = vmatpush.msra.mxu0 %v1182
      %1214 = vmatpush.msra.mxu0 %v1180
      %1215 = vmatpush.msra.mxu0 %v1178
      %1216 = vmatpush.msra.mxu0 %v1176
      %1217 = vmatmul.f32.gmra.mxu0 %v1190
      %v1218 = vpop.f32.mrf.mxu0
      %v1219 = vadd.f32 0.0, %v1218
      %1220 = vmatmul.f32.gmra.mxu0 %v1193
      %v1221 = vpop.f32.mrf.mxu0
      %v1222 = vadd.f32 0.0, %v1221
      %1223 = vmatmul.f32.gmra.mxu0 %v1196
      %v1224 = vpop.f32.mrf.mxu0
      %v1225 = vadd.f32 0.0, %v1224
      %1226 = vmatmul.f32.gmra.mxu0 %v1199
      %v1227 = vpop.f32.mrf.mxu0
      %v1228 = vadd.f32 0.0, %v1227
      %1229 = vdwg.mxu0
      %1230 = vmatpush.msra.mxu0 0.0
      %1231 = vmatpush.msra.mxu0 0.0
      %1232 = vmatpush.msra.mxu0 0.0
      %1233 = vmatpush.msra.mxu0 0.0
      %1234 = vmatpush.msra.mxu0 0.0
      %1235 = vmatpush.msra.mxu0 0.0
      %1236 = vmatpush.msra.mxu0 0.0
      %1237 = vmatpush.msra.mxu0 0.0
      %1238 = vmatpush.msra.mxu0 0.0
      %1239 = vmatpush.msra.mxu0 0.0
      %1240 = vmatpush.msra.mxu0 0.0
      %1241 = vmatpush.msra.mxu0 0.0
      %1242 = vmatpush.msra.mxu0 %v1183
      %1243 = vmatpush.msra.mxu0 %v1181
      %1244 = vmatpush.msra.mxu0 %v1179
      %1245 = vmatpush.msra.mxu0 %v1177
      %1246 = vmatmul.f32.gmra.mxu0 %v1190
      %v1247 = vpop.f32.mrf.mxu0
      %v1248 = vadd.f32 0.0, %v1247
      %1249 = vmatmul.f32.gmra.mxu0 %v1193
      %v1250 = vpop.f32.mrf.mxu0
      %v1251 = vadd.f32 0.0, %v1250
      %1252 = vmatmul.f32.gmra.mxu0 %v1196
      %v1253 = vpop.f32.mrf.mxu0
      %v1254 = vadd.f32 0.0, %v1253
      %1255 = vmatmul.f32.gmra.mxu0 %v1199
      %v1256 = vpop.f32.mrf.mxu0
      %v1257 = vadd.f32 0.0, %v1256
      %1258 = vdwg.mxu0
      %v1259 = vadd.f32 %v1139, %v1219
      %v1260 = vadd.f32 %v1140, %v1248
      %v1261 = vadd.f32 %v1141, %v1222
      %v1262 = vadd.f32 %v1142, %v1251
      %v1263 = vadd.f32 %v1143, %v1225
      %v1264 = vadd.f32 %v1144, %v1254
      %v1265 = vadd.f32 %v1145, %v1228
      %v1266 = vadd.f32 %v1146, %v1257
      %1267 = vrot.lane.b32.xlu0 %v333, 111
      %v1268 = vpop.permute.xlu0 %1267
      %1269 = vrot.lane.b32.xlu0 %v335, 111
      %v1270 = vpop.permute.xlu0 %1269
      %1271 = vrot.lane.b32.xlu0 %v337, 111
      %v1272 = vpop.permute.xlu0 %1271
      %1273 = vrot.lane.b32.xlu0 %v339, 111
      %v1274 = vpop.permute.xlu0 %1273
      %1275 = vrot.lane.b32.xlu0 %v334, 111
      %v1276 = vpop.permute.xlu0 %1275
      %1277 = vrot.lane.b32.xlu0 %v336, 111
      %v1278 = vpop.permute.xlu0 %1277
      %1279 = vrot.lane.b32.xlu0 %v338, 111
      %v1280 = vpop.permute.xlu0 %1279
      %1281 = vrot.lane.b32.xlu0 %v340, 111
      %v1282 = vpop.permute.xlu0 %1281
      %vm1283 = vcmp.lt.s32.totalorder %v342, 111
      %v1284 = vsel %vm1283, %v1268, %v1276
      %v1285 = vsel %vm1283, %v1270, %v1278
      %v1286 = vsel %vm1283, %v1272, %v1280
      %v1287 = vsel %vm1283, %v1274, %v1282
      %v1288 = vsel %vm1283, %v1276, %v1268
      %v1289 = vsel %vm1283, %v1278, %v1270
      %v1290 = vsel %vm1283, %v1280, %v1272
      %v1291 = vsel %vm1283, %v1282, %v1274
      %vm1292 = vmand %vm348, %vm352
      %vm1293 = vmand %vm349, %vm353
      %v1294 = vsel %vm1292, 1, 0
      %v1295 = vsel %vm1293, 1, 0
      %vm1296 = vcmp.eq.s32.totalorder %v1294, 1
      %vm1297 = vcmp.eq.s32.totalorder %v1295, 1
      %v1298 = vsel %vm1296, %v1284, 0.0
      %v1299 = vsel %vm1297, %v1288, 0.0
      %v1300 = vsel %vm1296, %v1285, 0.0
      %v1301 = vsel %vm1297, %v1289, 0.0
      %v1302 = vsel %vm1296, %v1286, 0.0
      %v1303 = vsel %vm1297, %v1290, 0.0
      %v1304 = vsel %vm1296, %v1287, 0.0
      %v1305 = vsel %vm1297, %v1291, 0.0
      %s1306 = scalar_lea.vmem %s1, 256
      %v1307 = vld [vmem:[%s1306] sm:$0xff]
      %v1308 = vld [vmem:[%s1306 + $0x8] sm:$0xff]
      %v1309 = vld [vmem:[%s1306 + $0x10] sm:$0xff]
      %v1310 = vld [vmem:[%s1306 + $0x18] sm:$0xff]
      %v1312 = vsel %vm439, %v1307, 0
      %v1315 = vsel %vm439, %v1308, 0
      %v1318 = vsel %vm439, %v1309, 0
      %v1321 = vsel %vm439, %v1310, 0
      %1323 = vmatpush.msra.mxu0 0.0
      %1324 = vmatpush.msra.mxu0 0.0
      %1325 = vmatpush.msra.mxu0 0.0
      %1326 = vmatpush.msra.mxu0 0.0
      %1327 = vmatpush.msra.mxu0 0.0
      %1328 = vmatpush.msra.mxu0 0.0
      %1329 = vmatpush.msra.mxu0 0.0
      %1330 = vmatpush.msra.mxu0 0.0
      %1331 = vmatpush.msra.mxu0 0.0
      %1332 = vmatpush.msra.mxu0 0.0
      %1333 = vmatpush.msra.mxu0 0.0
      %1334 = vmatpush.msra.mxu0 0.0
      %1335 = vmatpush.msra.mxu0 %v1304
      %1336 = vmatpush.msra.mxu0 %v1302
      %1337 = vmatpush.msra.mxu0 %v1300
      %1338 = vmatpush.msra.mxu0 %v1298
      %1339 = vmatmul.f32.gmra.mxu0 %v1312
      %v1340 = vpop.f32.mrf.mxu0
      %v1341 = vadd.f32 0.0, %v1340
      %1342 = vmatmul.f32.gmra.mxu0 %v1315
      %v1343 = vpop.f32.mrf.mxu0
      %v1344 = vadd.f32 0.0, %v1343
      %1345 = vmatmul.f32.gmra.mxu0 %v1318
      %v1346 = vpop.f32.mrf.mxu0
      %v1347 = vadd.f32 0.0, %v1346
      %1348 = vmatmul.f32.gmra.mxu0 %v1321
      %v1349 = vpop.f32.mrf.mxu0
      %v1350 = vadd.f32 0.0, %v1349
      %1351 = vdwg.mxu0
      %1352 = vmatpush.msra.mxu0 0.0
      %1353 = vmatpush.msra.mxu0 0.0
      %1354 = vmatpush.msra.mxu0 0.0
      %1355 = vmatpush.msra.mxu0 0.0
      %1356 = vmatpush.msra.mxu0 0.0
      %1357 = vmatpush.msra.mxu0 0.0
      %1358 = vmatpush.msra.mxu0 0.0
      %1359 = vmatpush.msra.mxu0 0.0
      %1360 = vmatpush.msra.mxu0 0.0
      %1361 = vmatpush.msra.mxu0 0.0
      %1362 = vmatpush.msra.mxu0 0.0
      %1363 = vmatpush.msra.mxu0 0.0
      %1364 = vmatpush.msra.mxu0 %v1305
      %1365 = vmatpush.msra.mxu0 %v1303
      %1366 = vmatpush.msra.mxu0 %v1301
      %1367 = vmatpush.msra.mxu0 %v1299
      %1368 = vmatmul.f32.gmra.mxu0 %v1312
      %v1369 = vpop.f32.mrf.mxu0
      %v1370 = vadd.f32 0.0, %v1369
      %1371 = vmatmul.f32.gmra.mxu0 %v1315
      %v1372 = vpop.f32.mrf.mxu0
      %v1373 = vadd.f32 0.0, %v1372
      %1374 = vmatmul.f32.gmra.mxu0 %v1318
      %v1375 = vpop.f32.mrf.mxu0
      %v1376 = vadd.f32 0.0, %v1375
      %1377 = vmatmul.f32.gmra.mxu0 %v1321
      %v1378 = vpop.f32.mrf.mxu0
      %v1379 = vadd.f32 0.0, %v1378
      %1380 = vdwg.mxu0
      %v1381 = vadd.f32 %v1259, %v1341
      %v1382 = vadd.f32 %v1260, %v1370
      %v1383 = vadd.f32 %v1261, %v1344
      %v1384 = vadd.f32 %v1262, %v1373
      %v1385 = vadd.f32 %v1263, %v1347
      %v1386 = vadd.f32 %v1264, %v1376
      %v1387 = vadd.f32 %v1265, %v1350
      %v1388 = vadd.f32 %v1266, %v1379
      %v1389 = vld [vmem:[%s2] sm:$0xff]
      %v1390 = vld [vmem:[%s2 + $0x8] sm:$0xff]
      %v1391 = vld [vmem:[%s2 + $0x10] sm:$0xff]
      %v1392 = vld [vmem:[%s2 + $0x18] sm:$0xff]
      %1394 = vset.pattern.permute.xlu0 0
      %1395 = vperm.xlu0 %1394, %v1389
      %v1396 = vpop.permute.xlu0 %1395
      %1399 = vset.pattern.permute.xlu0 0
      %1400 = vperm.xlu0 %1399, %v1390
      %v1401 = vpop.permute.xlu0 %1400
      %1404 = vset.pattern.permute.xlu0 0
      %1405 = vperm.xlu0 %1404, %v1391
      %v1406 = vpop.permute.xlu0 %1405
      %1409 = vset.pattern.permute.xlu0 0
      %1410 = vperm.xlu0 %1409, %v1392
      %v1411 = vpop.permute.xlu0 %1410
      %v1413 = vadd.f32 %v1381, %v1396
      %v1414 = vadd.f32 %v1382, %v1396
      %v1415 = vadd.f32 %v1383, %v1401
      %v1416 = vadd.f32 %v1384, %v1401
      %v1417 = vadd.f32 %v1385, %v1406
      %v1418 = vadd.f32 %v1386, %v1406
      %v1419 = vadd.f32 %v1387, %v1411
      %v1420 = vadd.f32 %v1388, %v1411
      %v1421 = vmax.f32 %v1413, 0.0
      %v1422 = vmax.f32 %v1414, 0.0
      %v1423 = vmax.f32 %v1415, 0.0
      %v1424 = vmax.f32 %v1416, 0.0
      %v1425 = vmax.f32 %v1417, 0.0
      %v1426 = vmax.f32 %v1418, 0.0
      %v1427 = vmax.f32 %v1419, 0.0
      %v1428 = vmax.f32 %v1420, 0.0
      %1429 = vrot.lane.b32.xlu0 %v1421, 17
      %v1430 = vpop.permute.xlu0 %1429
      %1431 = vrot.lane.b32.xlu0 %v1423, 17
      %v1432 = vpop.permute.xlu0 %1431
      %1433 = vrot.lane.b32.xlu0 %v1425, 17
      %v1434 = vpop.permute.xlu0 %1433
      %1435 = vrot.lane.b32.xlu0 %v1427, 17
      %v1436 = vpop.permute.xlu0 %1435
      %1437 = vrot.lane.b32.xlu0 %v1422, 17
      %v1438 = vpop.permute.xlu0 %1437
      %1439 = vrot.lane.b32.xlu0 %v1424, 17
      %v1440 = vpop.permute.xlu0 %1439
      %1441 = vrot.lane.b32.xlu0 %v1426, 17
      %v1442 = vpop.permute.xlu0 %1441
      %1443 = vrot.lane.b32.xlu0 %v1428, 17
      %v1444 = vpop.permute.xlu0 %1443
      %v1445 = vsel %vm370, %v1430, %v1438
      %v1446 = vsel %vm370, %v1432, %v1440
      %v1447 = vsel %vm370, %v1434, %v1442
      %v1448 = vsel %vm370, %v1436, %v1444
      %v1449 = vsel %vm370, %v1438, %v1430
      %v1450 = vsel %vm370, %v1440, %v1432
      %v1451 = vsel %vm370, %v1442, %v1434
      %v1452 = vsel %vm370, %v1444, %v1436
      %v1453 = vsel %vm383, %v1449, 0.0
      %v1454 = vsel %vm384, %v1445, 0.0
      %v1455 = vsel %vm383, %v1450, 0.0
      %v1456 = vsel %vm384, %v1446, 0.0
      %v1457 = vsel %vm383, %v1451, 0.0
      %v1458 = vsel %vm384, %v1447, 0.0
      %v1459 = vsel %vm383, %v1452, 0.0
      %v1460 = vsel %vm384, %v1448, 0.0
      %v1461 = vld [vmem:[%s3] sm:$0xff]
      %v1462 = vld [vmem:[%s3 + $0x8] sm:$0xff]
      %v1463 = vld [vmem:[%s3 + $0x10] sm:$0xff]
      %v1464 = vld [vmem:[%s3 + $0x18] sm:$0xff]
      %1465 = vrot.lane.b32.xlu0 %v1421, 16
      %v1466 = vpop.permute.xlu0 %1465
      %1467 = vrot.lane.b32.xlu0 %v1423, 16
      %v1468 = vpop.permute.xlu0 %1467
      %1469 = vrot.lane.b32.xlu0 %v1425, 16
      %v1470 = vpop.permute.xlu0 %1469
      %1471 = vrot.lane.b32.xlu0 %v1427, 16
      %v1472 = vpop.permute.xlu0 %1471
      %1473 = vrot.lane.b32.xlu0 %v1422, 16
      %v1474 = vpop.permute.xlu0 %1473
      %1475 = vrot.lane.b32.xlu0 %v1424, 16
      %v1476 = vpop.permute.xlu0 %1475
      %1477 = vrot.lane.b32.xlu0 %v1426, 16
      %v1478 = vpop.permute.xlu0 %1477
      %1479 = vrot.lane.b32.xlu0 %v1428, 16
      %v1480 = vpop.permute.xlu0 %1479
      %v1481 = vsel %vm413, %v1466, %v1474
      %v1482 = vsel %vm413, %v1468, %v1476
      %v1483 = vsel %vm413, %v1470, %v1478
      %v1484 = vsel %vm413, %v1472, %v1480
      %v1485 = vsel %vm413, %v1474, %v1466
      %v1486 = vsel %vm413, %v1476, %v1468
      %v1487 = vsel %vm413, %v1478, %v1470
      %v1488 = vsel %vm413, %v1480, %v1472
      %v1489 = vsel %vm424, %v1485, 0.0
      %v1490 = vsel %vm425, %v1481, 0.0
      %v1491 = vsel %vm424, %v1486, 0.0
      %v1492 = vsel %vm425, %v1482, 0.0
      %v1493 = vsel %vm424, %v1487, 0.0
      %v1494 = vsel %vm425, %v1483, 0.0
      %v1495 = vsel %vm424, %v1488, 0.0
      %v1496 = vsel %vm425, %v1484, 0.0
      %s1497 = scalar_lea.vmem %s3, 32
      %v1498 = vld [vmem:[%s1497] sm:$0xff]
      %v1499 = vld [vmem:[%s1497 + $0x8] sm:$0xff]
      %v1500 = vld [vmem:[%s1497 + $0x10] sm:$0xff]
      %v1501 = vld [vmem:[%s1497 + $0x18] sm:$0xff]
      %v1503 = vsel %vm439, %v1498, 0
      %v1506 = vsel %vm439, %v1499, 0
      %v1509 = vsel %vm439, %v1500, 0
      %v1512 = vsel %vm439, %v1501, 0
      %1514 = vmatpush.msra.mxu0 0.0
      %1515 = vmatpush.msra.mxu0 0.0
      %1516 = vmatpush.msra.mxu0 0.0
      %1517 = vmatpush.msra.mxu0 0.0
      %1518 = vmatpush.msra.mxu0 0.0
      %1519 = vmatpush.msra.mxu0 0.0
      %1520 = vmatpush.msra.mxu0 0.0
      %1521 = vmatpush.msra.mxu0 0.0
      %1522 = vmatpush.msra.mxu0 0.0
      %1523 = vmatpush.msra.mxu0 0.0
      %1524 = vmatpush.msra.mxu0 0.0
      %1525 = vmatpush.msra.mxu0 0.0
      %1526 = vmatpush.msra.mxu0 %v1495
      %1527 = vmatpush.msra.mxu0 %v1493
      %1528 = vmatpush.msra.mxu0 %v1491
      %1529 = vmatpush.msra.mxu0 %v1489
      %1530 = vmatmul.f32.gmra.mxu0 %v1503
      %v1531 = vpop.f32.mrf.mxu0
      %v1532 = vadd.f32 0.0, %v1531
      %1533 = vmatmul.f32.gmra.mxu0 %v1506
      %v1534 = vpop.f32.mrf.mxu0
      %v1535 = vadd.f32 0.0, %v1534
      %1536 = vmatmul.f32.gmra.mxu0 %v1509
      %v1537 = vpop.f32.mrf.mxu0
      %v1538 = vadd.f32 0.0, %v1537
      %1539 = vmatmul.f32.gmra.mxu0 %v1512
      %v1540 = vpop.f32.mrf.mxu0
      %v1541 = vadd.f32 0.0, %v1540
      %1542 = vdwg.mxu0
      %1543 = vmatpush.msra.mxu0 0.0
      %1544 = vmatpush.msra.mxu0 0.0
      %1545 = vmatpush.msra.mxu0 0.0
      %1546 = vmatpush.msra.mxu0 0.0
      %1547 = vmatpush.msra.mxu0 0.0
      %1548 = vmatpush.msra.mxu0 0.0
      %1549 = vmatpush.msra.mxu0 0.0
      %1550 = vmatpush.msra.mxu0 0.0
      %1551 = vmatpush.msra.mxu0 0.0
      %1552 = vmatpush.msra.mxu0 0.0
      %1553 = vmatpush.msra.mxu0 0.0
      %1554 = vmatpush.msra.mxu0 0.0
      %1555 = vmatpush.msra.mxu0 %v1496
      %1556 = vmatpush.msra.mxu0 %v1494
      %1557 = vmatpush.msra.mxu0 %v1492
      %1558 = vmatpush.msra.mxu0 %v1490
      %1559 = vmatmul.f32.gmra.mxu0 %v1503
      %v1560 = vpop.f32.mrf.mxu0
      %v1561 = vadd.f32 0.0, %v1560
      %1562 = vmatmul.f32.gmra.mxu0 %v1506
      %v1563 = vpop.f32.mrf.mxu0
      %v1564 = vadd.f32 0.0, %v1563
      %1565 = vmatmul.f32.gmra.mxu0 %v1509
      %v1566 = vpop.f32.mrf.mxu0
      %v1567 = vadd.f32 0.0, %v1566
      %1568 = vmatmul.f32.gmra.mxu0 %v1512
      %v1569 = vpop.f32.mrf.mxu0
      %v1570 = vadd.f32 0.0, %v1569
      %1571 = vdwg.mxu0
      %v1573 = vsel %vm439, %v1461, 0
      %v1576 = vsel %vm439, %v1462, 0
      %v1579 = vsel %vm439, %v1463, 0
      %v1582 = vsel %vm439, %v1464, 0
      %1584 = vmatpush.msra.mxu0 0.0
      %1585 = vmatpush.msra.mxu0 0.0
      %1586 = vmatpush.msra.mxu0 0.0
      %1587 = vmatpush.msra.mxu0 0.0
      %1588 = vmatpush.msra.mxu0 0.0
      %1589 = vmatpush.msra.mxu0 0.0
      %1590 = vmatpush.msra.mxu0 0.0
      %1591 = vmatpush.msra.mxu0 0.0
      %1592 = vmatpush.msra.mxu0 0.0
      %1593 = vmatpush.msra.mxu0 0.0
      %1594 = vmatpush.msra.mxu0 0.0
      %1595 = vmatpush.msra.mxu0 0.0
      %1596 = vmatpush.msra.mxu0 %v1459
      %1597 = vmatpush.msra.mxu0 %v1457
      %1598 = vmatpush.msra.mxu0 %v1455
      %1599 = vmatpush.msra.mxu0 %v1453
      %1600 = vmatmul.f32.gmra.mxu0 %v1573
      %v1601 = vpop.f32.mrf.mxu0
      %v1602 = vadd.f32 %v1532, %v1601
      %1603 = vmatmul.f32.gmra.mxu0 %v1576
      %v1604 = vpop.f32.mrf.mxu0
      %v1605 = vadd.f32 %v1535, %v1604
      %1606 = vmatmul.f32.gmra.mxu0 %v1579
      %v1607 = vpop.f32.mrf.mxu0
      %v1608 = vadd.f32 %v1538, %v1607
      %1609 = vmatmul.f32.gmra.mxu0 %v1582
      %v1610 = vpop.f32.mrf.mxu0
      %v1611 = vadd.f32 %v1541, %v1610
      %1612 = vdwg.mxu0
      %1613 = vmatpush.msra.mxu0 0.0
      %1614 = vmatpush.msra.mxu0 0.0
      %1615 = vmatpush.msra.mxu0 0.0
      %1616 = vmatpush.msra.mxu0 0.0
      %1617 = vmatpush.msra.mxu0 0.0
      %1618 = vmatpush.msra.mxu0 0.0
      %1619 = vmatpush.msra.mxu0 0.0
      %1620 = vmatpush.msra.mxu0 0.0
      %1621 = vmatpush.msra.mxu0 0.0
      %1622 = vmatpush.msra.mxu0 0.0
      %1623 = vmatpush.msra.mxu0 0.0
      %1624 = vmatpush.msra.mxu0 0.0
      %1625 = vmatpush.msra.mxu0 %v1460
      %1626 = vmatpush.msra.mxu0 %v1458
      %1627 = vmatpush.msra.mxu0 %v1456
      %1628 = vmatpush.msra.mxu0 %v1454
      %1629 = vmatmul.f32.gmra.mxu0 %v1573
      %v1630 = vpop.f32.mrf.mxu0
      %v1631 = vadd.f32 %v1561, %v1630
      %1632 = vmatmul.f32.gmra.mxu0 %v1576
      %v1633 = vpop.f32.mrf.mxu0
      %v1634 = vadd.f32 %v1564, %v1633
      %1635 = vmatmul.f32.gmra.mxu0 %v1579
      %v1636 = vpop.f32.mrf.mxu0
      %v1637 = vadd.f32 %v1567, %v1636
      %1638 = vmatmul.f32.gmra.mxu0 %v1582
      %v1639 = vpop.f32.mrf.mxu0
      %v1640 = vadd.f32 %v1570, %v1639
      %1641 = vdwg.mxu0
      %1642 = vrot.lane.b32.xlu0 %v1421, 15
      %v1643 = vpop.permute.xlu0 %1642
      %1644 = vrot.lane.b32.xlu0 %v1423, 15
      %v1645 = vpop.permute.xlu0 %1644
      %1646 = vrot.lane.b32.xlu0 %v1425, 15
      %v1647 = vpop.permute.xlu0 %1646
      %1648 = vrot.lane.b32.xlu0 %v1427, 15
      %v1649 = vpop.permute.xlu0 %1648
      %1650 = vrot.lane.b32.xlu0 %v1422, 15
      %v1651 = vpop.permute.xlu0 %1650
      %1652 = vrot.lane.b32.xlu0 %v1424, 15
      %v1653 = vpop.permute.xlu0 %1652
      %1654 = vrot.lane.b32.xlu0 %v1426, 15
      %v1655 = vpop.permute.xlu0 %1654
      %1656 = vrot.lane.b32.xlu0 %v1428, 15
      %v1657 = vpop.permute.xlu0 %1656
      %v1658 = vsel %vm596, %v1643, %v1651
      %v1659 = vsel %vm596, %v1645, %v1653
      %v1660 = vsel %vm596, %v1647, %v1655
      %v1661 = vsel %vm596, %v1649, %v1657
      %v1662 = vsel %vm596, %v1651, %v1643
      %v1663 = vsel %vm596, %v1653, %v1645
      %v1664 = vsel %vm596, %v1655, %v1647
      %v1665 = vsel %vm596, %v1657, %v1649
      %v1666 = vsel %vm609, %v1662, 0.0
      %v1667 = vsel %vm610, %v1658, 0.0
      %v1668 = vsel %vm609, %v1663, 0.0
      %v1669 = vsel %vm610, %v1659, 0.0
      %v1670 = vsel %vm609, %v1664, 0.0
      %v1671 = vsel %vm610, %v1660, 0.0
      %v1672 = vsel %vm609, %v1665, 0.0
      %v1673 = vsel %vm610, %v1661, 0.0
      %s1674 = scalar_lea.vmem %s3, 64
      %v1675 = vld [vmem:[%s1674] sm:$0xff]
      %v1676 = vld [vmem:[%s1674 + $0x8] sm:$0xff]
      %v1677 = vld [vmem:[%s1674 + $0x10] sm:$0xff]
      %v1678 = vld [vmem:[%s1674 + $0x18] sm:$0xff]
      %v1680 = vsel %vm439, %v1675, 0
      %v1683 = vsel %vm439, %v1676, 0
      %v1686 = vsel %vm439, %v1677, 0
      %v1689 = vsel %vm439, %v1678, 0
      %1691 = vmatpush.msra.mxu0 0.0
      %1692 = vmatpush.msra.mxu0 0.0
      %1693 = vmatpush.msra.mxu0 0.0
      %1694 = vmatpush.msra.mxu0 0.0
      %1695 = vmatpush.msra.mxu0 0.0
      %1696 = vmatpush.msra.mxu0 0.0
      %1697 = vmatpush.msra.mxu0 0.0
      %1698 = vmatpush.msra.mxu0 0.0
      %1699 = vmatpush.msra.mxu0 0.0
      %1700 = vmatpush.msra.mxu0 0.0
      %1701 = vmatpush.msra.mxu0 0.0
      %1702 = vmatpush.msra.mxu0 0.0
      %1703 = vmatpush.msra.mxu0 %v1672
      %1704 = vmatpush.msra.mxu0 %v1670
      %1705 = vmatpush.msra.mxu0 %v1668
      %1706 = vmatpush.msra.mxu0 %v1666
      %1707 = vmatmul.f32.gmra.mxu0 %v1680
      %v1708 = vpop.f32.mrf.mxu0
      %v1709 = vadd.f32 0.0, %v1708
      %1710 = vmatmul.f32.gmra.mxu0 %v1683
      %v1711 = vpop.f32.mrf.mxu0
      %v1712 = vadd.f32 0.0, %v1711
      %1713 = vmatmul.f32.gmra.mxu0 %v1686
      %v1714 = vpop.f32.mrf.mxu0
      %v1715 = vadd.f32 0.0, %v1714
      %1716 = vmatmul.f32.gmra.mxu0 %v1689
      %v1717 = vpop.f32.mrf.mxu0
      %v1718 = vadd.f32 0.0, %v1717
      %1719 = vdwg.mxu0
      %1720 = vmatpush.msra.mxu0 0.0
      %1721 = vmatpush.msra.mxu0 0.0
      %1722 = vmatpush.msra.mxu0 0.0
      %1723 = vmatpush.msra.mxu0 0.0
      %1724 = vmatpush.msra.mxu0 0.0
      %1725 = vmatpush.msra.mxu0 0.0
      %1726 = vmatpush.msra.mxu0 0.0
      %1727 = vmatpush.msra.mxu0 0.0
      %1728 = vmatpush.msra.mxu0 0.0
      %1729 = vmatpush.msra.mxu0 0.0
      %1730 = vmatpush.msra.mxu0 0.0
      %1731 = vmatpush.msra.mxu0 0.0
      %1732 = vmatpush.msra.mxu0 %v1673
      %1733 = vmatpush.msra.mxu0 %v1671
      %1734 = vmatpush.msra.mxu0 %v1669
      %1735 = vmatpush.msra.mxu0 %v1667
      %1736 = vmatmul.f32.gmra.mxu0 %v1680
      %v1737 = vpop.f32.mrf.mxu0
      %v1738 = vadd.f32 0.0, %v1737
      %1739 = vmatmul.f32.gmra.mxu0 %v1683
      %v1740 = vpop.f32.mrf.mxu0
      %v1741 = vadd.f32 0.0, %v1740
      %1742 = vmatmul.f32.gmra.mxu0 %v1686
      %v1743 = vpop.f32.mrf.mxu0
      %v1744 = vadd.f32 0.0, %v1743
      %1745 = vmatmul.f32.gmra.mxu0 %v1689
      %v1746 = vpop.f32.mrf.mxu0
      %v1747 = vadd.f32 0.0, %v1746
      %1748 = vdwg.mxu0
      %v1749 = vadd.f32 %v1602, %v1709
      %v1750 = vadd.f32 %v1631, %v1738
      %v1751 = vadd.f32 %v1605, %v1712
      %v1752 = vadd.f32 %v1634, %v1741
      %v1753 = vadd.f32 %v1608, %v1715
      %v1754 = vadd.f32 %v1637, %v1744
      %v1755 = vadd.f32 %v1611, %v1718
      %v1756 = vadd.f32 %v1640, %v1747
      %1757 = vrot.lane.b32.xlu0 %v1421, 1
      %v1758 = vpop.permute.xlu0 %1757
      %1759 = vrot.lane.b32.xlu0 %v1423, 1
      %v1760 = vpop.permute.xlu0 %1759
      %1761 = vrot.lane.b32.xlu0 %v1425, 1
      %v1762 = vpop.permute.xlu0 %1761
      %1763 = vrot.lane.b32.xlu0 %v1427, 1
      %v1764 = vpop.permute.xlu0 %1763
      %1765 = vrot.lane.b32.xlu0 %v1422, 1
      %v1766 = vpop.permute.xlu0 %1765
      %1767 = vrot.lane.b32.xlu0 %v1424, 1
      %v1768 = vpop.permute.xlu0 %1767
      %1769 = vrot.lane.b32.xlu0 %v1426, 1
      %v1770 = vpop.permute.xlu0 %1769
      %1771 = vrot.lane.b32.xlu0 %v1428, 1
      %v1772 = vpop.permute.xlu0 %1771
      %v1773 = vsel %vm718, %v1758, %v1766
      %v1774 = vsel %vm718, %v1760, %v1768
      %v1775 = vsel %vm718, %v1762, %v1770
      %v1776 = vsel %vm718, %v1764, %v1772
      %v1777 = vsel %vm718, %v1766, %v1758
      %v1778 = vsel %vm718, %v1768, %v1760
      %v1779 = vsel %vm718, %v1770, %v1762
      %v1780 = vsel %vm718, %v1772, %v1764
      %v1781 = vsel %vm729, %v1777, 0.0
      %v1782 = vsel %vm730, %v1773, 0.0
      %v1783 = vsel %vm729, %v1778, 0.0
      %v1784 = vsel %vm730, %v1774, 0.0
      %v1785 = vsel %vm729, %v1779, 0.0
      %v1786 = vsel %vm730, %v1775, 0.0
      %v1787 = vsel %vm729, %v1780, 0.0
      %v1788 = vsel %vm730, %v1776, 0.0
      %s1789 = scalar_lea.vmem %s3, 96
      %v1790 = vld [vmem:[%s1789] sm:$0xff]
      %v1791 = vld [vmem:[%s1789 + $0x8] sm:$0xff]
      %v1792 = vld [vmem:[%s1789 + $0x10] sm:$0xff]
      %v1793 = vld [vmem:[%s1789 + $0x18] sm:$0xff]
      %v1795 = vsel %vm439, %v1790, 0
      %v1798 = vsel %vm439, %v1791, 0
      %v1801 = vsel %vm439, %v1792, 0
      %v1804 = vsel %vm439, %v1793, 0
      %1806 = vmatpush.msra.mxu0 0.0
      %1807 = vmatpush.msra.mxu0 0.0
      %1808 = vmatpush.msra.mxu0 0.0
      %1809 = vmatpush.msra.mxu0 0.0
      %1810 = vmatpush.msra.mxu0 0.0
      %1811 = vmatpush.msra.mxu0 0.0
      %1812 = vmatpush.msra.mxu0 0.0
      %1813 = vmatpush.msra.mxu0 0.0
      %1814 = vmatpush.msra.mxu0 0.0
      %1815 = vmatpush.msra.mxu0 0.0
      %1816 = vmatpush.msra.mxu0 0.0
      %1817 = vmatpush.msra.mxu0 0.0
      %1818 = vmatpush.msra.mxu0 %v1787
      %1819 = vmatpush.msra.mxu0 %v1785
      %1820 = vmatpush.msra.mxu0 %v1783
      %1821 = vmatpush.msra.mxu0 %v1781
      %1822 = vmatmul.f32.gmra.mxu0 %v1795
      %v1823 = vpop.f32.mrf.mxu0
      %v1824 = vadd.f32 0.0, %v1823
      %1825 = vmatmul.f32.gmra.mxu0 %v1798
      %v1826 = vpop.f32.mrf.mxu0
      %v1827 = vadd.f32 0.0, %v1826
      %1828 = vmatmul.f32.gmra.mxu0 %v1801
      %v1829 = vpop.f32.mrf.mxu0
      %v1830 = vadd.f32 0.0, %v1829
      %1831 = vmatmul.f32.gmra.mxu0 %v1804
      %v1832 = vpop.f32.mrf.mxu0
      %v1833 = vadd.f32 0.0, %v1832
      %1834 = vdwg.mxu0
      %1835 = vmatpush.msra.mxu0 0.0
      %1836 = vmatpush.msra.mxu0 0.0
      %1837 = vmatpush.msra.mxu0 0.0
      %1838 = vmatpush.msra.mxu0 0.0
      %1839 = vmatpush.msra.mxu0 0.0
      %1840 = vmatpush.msra.mxu0 0.0
      %1841 = vmatpush.msra.mxu0 0.0
      %1842 = vmatpush.msra.mxu0 0.0
      %1843 = vmatpush.msra.mxu0 0.0
      %1844 = vmatpush.msra.mxu0 0.0
      %1845 = vmatpush.msra.mxu0 0.0
      %1846 = vmatpush.msra.mxu0 0.0
      %1847 = vmatpush.msra.mxu0 %v1788
      %1848 = vmatpush.msra.mxu0 %v1786
      %1849 = vmatpush.msra.mxu0 %v1784
      %1850 = vmatpush.msra.mxu0 %v1782
      %1851 = vmatmul.f32.gmra.mxu0 %v1795
      %v1852 = vpop.f32.mrf.mxu0
      %v1853 = vadd.f32 0.0, %v1852
      %1854 = vmatmul.f32.gmra.mxu0 %v1798
      %v1855 = vpop.f32.mrf.mxu0
      %v1856 = vadd.f32 0.0, %v1855
      %1857 = vmatmul.f32.gmra.mxu0 %v1801
      %v1858 = vpop.f32.mrf.mxu0
      %v1859 = vadd.f32 0.0, %v1858
      %1860 = vmatmul.f32.gmra.mxu0 %v1804
      %v1861 = vpop.f32.mrf.mxu0
      %v1862 = vadd.f32 0.0, %v1861
      %1863 = vdwg.mxu0
      %v1864 = vadd.f32 %v1749, %v1824
      %v1865 = vadd.f32 %v1750, %v1853
      %v1866 = vadd.f32 %v1751, %v1827
      %v1867 = vadd.f32 %v1752, %v1856
      %v1868 = vadd.f32 %v1753, %v1830
      %v1869 = vadd.f32 %v1754, %v1859
      %v1870 = vadd.f32 %v1755, %v1833
      %v1871 = vadd.f32 %v1756, %v1862
      %s1872 = scalar_lea.vmem %s3, 128
      %v1873 = vld [vmem:[%s1872] sm:$0xff]
      %v1874 = vld [vmem:[%s1872 + $0x8] sm:$0xff]
      %v1875 = vld [vmem:[%s1872 + $0x10] sm:$0xff]
      %v1876 = vld [vmem:[%s1872 + $0x18] sm:$0xff]
      %v1878 = vsel %vm439, %v1873, 0
      %v1881 = vsel %vm439, %v1874, 0
      %v1884 = vsel %vm439, %v1875, 0
      %v1887 = vsel %vm439, %v1876, 0
      %1889 = vmatpush.msra.mxu0 0.0
      %1890 = vmatpush.msra.mxu0 0.0
      %1891 = vmatpush.msra.mxu0 0.0
      %1892 = vmatpush.msra.mxu0 0.0
      %1893 = vmatpush.msra.mxu0 0.0
      %1894 = vmatpush.msra.mxu0 0.0
      %1895 = vmatpush.msra.mxu0 0.0
      %1896 = vmatpush.msra.mxu0 0.0
      %1897 = vmatpush.msra.mxu0 0.0
      %1898 = vmatpush.msra.mxu0 0.0
      %1899 = vmatpush.msra.mxu0 0.0
      %1900 = vmatpush.msra.mxu0 0.0
      %1901 = vmatpush.msra.mxu0 %v1427
      %1902 = vmatpush.msra.mxu0 %v1425
      %1903 = vmatpush.msra.mxu0 %v1423
      %1904 = vmatpush.msra.mxu0 %v1421
      %1905 = vmatmul.f32.gmra.mxu0 %v1878
      %v1906 = vpop.f32.mrf.mxu0
      %v1907 = vadd.f32 0.0, %v1906
      %1908 = vmatmul.f32.gmra.mxu0 %v1881
      %v1909 = vpop.f32.mrf.mxu0
      %v1910 = vadd.f32 0.0, %v1909
      %1911 = vmatmul.f32.gmra.mxu0 %v1884
      %v1912 = vpop.f32.mrf.mxu0
      %v1913 = vadd.f32 0.0, %v1912
      %1914 = vmatmul.f32.gmra.mxu0 %v1887
      %v1915 = vpop.f32.mrf.mxu0
      %v1916 = vadd.f32 0.0, %v1915
      %1917 = vdwg.mxu0
      %1918 = vmatpush.msra.mxu0 0.0
      %1919 = vmatpush.msra.mxu0 0.0
      %1920 = vmatpush.msra.mxu0 0.0
      %1921 = vmatpush.msra.mxu0 0.0
      %1922 = vmatpush.msra.mxu0 0.0
      %1923 = vmatpush.msra.mxu0 0.0
      %1924 = vmatpush.msra.mxu0 0.0
      %1925 = vmatpush.msra.mxu0 0.0
      %1926 = vmatpush.msra.mxu0 0.0
      %1927 = vmatpush.msra.mxu0 0.0
      %1928 = vmatpush.msra.mxu0 0.0
      %1929 = vmatpush.msra.mxu0 0.0
      %1930 = vmatpush.msra.mxu0 %v1428
      %1931 = vmatpush.msra.mxu0 %v1426
      %1932 = vmatpush.msra.mxu0 %v1424
      %1933 = vmatpush.msra.mxu0 %v1422
      %1934 = vmatmul.f32.gmra.mxu0 %v1878
      %v1935 = vpop.f32.mrf.mxu0
      %v1936 = vadd.f32 0.0, %v1935
      %1937 = vmatmul.f32.gmra.mxu0 %v1881
      %v1938 = vpop.f32.mrf.mxu0
      %v1939 = vadd.f32 0.0, %v1938
      %1940 = vmatmul.f32.gmra.mxu0 %v1884
      %v1941 = vpop.f32.mrf.mxu0
      %v1942 = vadd.f32 0.0, %v1941
      %1943 = vmatmul.f32.gmra.mxu0 %v1887
      %v1944 = vpop.f32.mrf.mxu0
      %v1945 = vadd.f32 0.0, %v1944
      %1946 = vdwg.mxu0
      %v1947 = vadd.f32 %v1864, %v1907
      %v1948 = vadd.f32 %v1865, %v1936
      %v1949 = vadd.f32 %v1866, %v1910
      %v1950 = vadd.f32 %v1867, %v1939
      %v1951 = vadd.f32 %v1868, %v1913
      %v1952 = vadd.f32 %v1869, %v1942
      %v1953 = vadd.f32 %v1870, %v1916
      %v1954 = vadd.f32 %v1871, %v1945
      %1955 = vrot.lane.b32.xlu0 %v1421, 127
      %v1956 = vpop.permute.xlu0 %1955
      %1957 = vrot.lane.b32.xlu0 %v1423, 127
      %v1958 = vpop.permute.xlu0 %1957
      %1959 = vrot.lane.b32.xlu0 %v1425, 127
      %v1960 = vpop.permute.xlu0 %1959
      %1961 = vrot.lane.b32.xlu0 %v1427, 127
      %v1962 = vpop.permute.xlu0 %1961
      %1963 = vrot.lane.b32.xlu0 %v1422, 127
      %v1964 = vpop.permute.xlu0 %1963
      %1965 = vrot.lane.b32.xlu0 %v1424, 127
      %v1966 = vpop.permute.xlu0 %1965
      %1967 = vrot.lane.b32.xlu0 %v1426, 127
      %v1968 = vpop.permute.xlu0 %1967
      %1969 = vrot.lane.b32.xlu0 %v1428, 127
      %v1970 = vpop.permute.xlu0 %1969
      %v1971 = vsel %vm921, %v1956, %v1964
      %v1972 = vsel %vm921, %v1958, %v1966
      %v1973 = vsel %vm921, %v1960, %v1968
      %v1974 = vsel %vm921, %v1962, %v1970
      %v1975 = vsel %vm921, %v1964, %v1956
      %v1976 = vsel %vm921, %v1966, %v1958
      %v1977 = vsel %vm921, %v1968, %v1960
      %v1978 = vsel %vm921, %v1970, %v1962
      %v1979 = vsel %vm932, %v1971, 0.0
      %v1980 = vsel %vm933, %v1975, 0.0
      %v1981 = vsel %vm932, %v1972, 0.0
      %v1982 = vsel %vm933, %v1976, 0.0
      %v1983 = vsel %vm932, %v1973, 0.0
      %v1984 = vsel %vm933, %v1977, 0.0
      %v1985 = vsel %vm932, %v1974, 0.0
      %v1986 = vsel %vm933, %v1978, 0.0
      %s1987 = scalar_lea.vmem %s3, 160
      %v1988 = vld [vmem:[%s1987] sm:$0xff]
      %v1989 = vld [vmem:[%s1987 + $0x8] sm:$0xff]
      %v1990 = vld [vmem:[%s1987 + $0x10] sm:$0xff]
      %v1991 = vld [vmem:[%s1987 + $0x18] sm:$0xff]
      %v1993 = vsel %vm439, %v1988, 0
      %v1996 = vsel %vm439, %v1989, 0
      %v1999 = vsel %vm439, %v1990, 0
      %v2002 = vsel %vm439, %v1991, 0
      %2004 = vmatpush.msra.mxu0 0.0
      %2005 = vmatpush.msra.mxu0 0.0
      %2006 = vmatpush.msra.mxu0 0.0
      %2007 = vmatpush.msra.mxu0 0.0
      %2008 = vmatpush.msra.mxu0 0.0
      %2009 = vmatpush.msra.mxu0 0.0
      %2010 = vmatpush.msra.mxu0 0.0
      %2011 = vmatpush.msra.mxu0 0.0
      %2012 = vmatpush.msra.mxu0 0.0
      %2013 = vmatpush.msra.mxu0 0.0
      %2014 = vmatpush.msra.mxu0 0.0
      %2015 = vmatpush.msra.mxu0 0.0
      %2016 = vmatpush.msra.mxu0 %v1985
      %2017 = vmatpush.msra.mxu0 %v1983
      %2018 = vmatpush.msra.mxu0 %v1981
      %2019 = vmatpush.msra.mxu0 %v1979
      %2020 = vmatmul.f32.gmra.mxu0 %v1993
      %v2021 = vpop.f32.mrf.mxu0
      %v2022 = vadd.f32 0.0, %v2021
      %2023 = vmatmul.f32.gmra.mxu0 %v1996
      %v2024 = vpop.f32.mrf.mxu0
      %v2025 = vadd.f32 0.0, %v2024
      %2026 = vmatmul.f32.gmra.mxu0 %v1999
      %v2027 = vpop.f32.mrf.mxu0
      %v2028 = vadd.f32 0.0, %v2027
      %2029 = vmatmul.f32.gmra.mxu0 %v2002
      %v2030 = vpop.f32.mrf.mxu0
      %v2031 = vadd.f32 0.0, %v2030
      %2032 = vdwg.mxu0
      %2033 = vmatpush.msra.mxu0 0.0
      %2034 = vmatpush.msra.mxu0 0.0
      %2035 = vmatpush.msra.mxu0 0.0
      %2036 = vmatpush.msra.mxu0 0.0
      %2037 = vmatpush.msra.mxu0 0.0
      %2038 = vmatpush.msra.mxu0 0.0
      %2039 = vmatpush.msra.mxu0 0.0
      %2040 = vmatpush.msra.mxu0 0.0
      %2041 = vmatpush.msra.mxu0 0.0
      %2042 = vmatpush.msra.mxu0 0.0
      %2043 = vmatpush.msra.mxu0 0.0
      %2044 = vmatpush.msra.mxu0 0.0
      %2045 = vmatpush.msra.mxu0 %v1986
      %2046 = vmatpush.msra.mxu0 %v1984
      %2047 = vmatpush.msra.mxu0 %v1982
      %2048 = vmatpush.msra.mxu0 %v1980
      %2049 = vmatmul.f32.gmra.mxu0 %v1993
      %v2050 = vpop.f32.mrf.mxu0
      %v2051 = vadd.f32 0.0, %v2050
      %2052 = vmatmul.f32.gmra.mxu0 %v1996
      %v2053 = vpop.f32.mrf.mxu0
      %v2054 = vadd.f32 0.0, %v2053
      %2055 = vmatmul.f32.gmra.mxu0 %v1999
      %v2056 = vpop.f32.mrf.mxu0
      %v2057 = vadd.f32 0.0, %v2056
      %2058 = vmatmul.f32.gmra.mxu0 %v2002
      %v2059 = vpop.f32.mrf.mxu0
      %v2060 = vadd.f32 0.0, %v2059
      %2061 = vdwg.mxu0
      %v2062 = vadd.f32 %v1947, %v2022
      %v2063 = vadd.f32 %v1948, %v2051
      %v2064 = vadd.f32 %v1949, %v2025
      %v2065 = vadd.f32 %v1950, %v2054
      %v2066 = vadd.f32 %v1951, %v2028
      %v2067 = vadd.f32 %v1952, %v2057
      %v2068 = vadd.f32 %v1953, %v2031
      %v2069 = vadd.f32 %v1954, %v2060
      %2070 = vrot.lane.b32.xlu0 %v1421, 113
      %v2071 = vpop.permute.xlu0 %2070
      %2072 = vrot.lane.b32.xlu0 %v1423, 113
      %v2073 = vpop.permute.xlu0 %2072
      %2074 = vrot.lane.b32.xlu0 %v1425, 113
      %v2075 = vpop.permute.xlu0 %2074
      %2076 = vrot.lane.b32.xlu0 %v1427, 113
      %v2077 = vpop.permute.xlu0 %2076
      %2078 = vrot.lane.b32.xlu0 %v1422, 113
      %v2079 = vpop.permute.xlu0 %2078
      %2080 = vrot.lane.b32.xlu0 %v1424, 113
      %v2081 = vpop.permute.xlu0 %2080
      %2082 = vrot.lane.b32.xlu0 %v1426, 113
      %v2083 = vpop.permute.xlu0 %2082
      %2084 = vrot.lane.b32.xlu0 %v1428, 113
      %v2085 = vpop.permute.xlu0 %2084
      %v2086 = vsel %vm1041, %v2071, %v2079
      %v2087 = vsel %vm1041, %v2073, %v2081
      %v2088 = vsel %vm1041, %v2075, %v2083
      %v2089 = vsel %vm1041, %v2077, %v2085
      %v2090 = vsel %vm1041, %v2079, %v2071
      %v2091 = vsel %vm1041, %v2081, %v2073
      %v2092 = vsel %vm1041, %v2083, %v2075
      %v2093 = vsel %vm1041, %v2085, %v2077
      %v2094 = vsel %vm1054, %v2086, 0.0
      %v2095 = vsel %vm1055, %v2090, 0.0
      %v2096 = vsel %vm1054, %v2087, 0.0
      %v2097 = vsel %vm1055, %v2091, 0.0
      %v2098 = vsel %vm1054, %v2088, 0.0
      %v2099 = vsel %vm1055, %v2092, 0.0
      %v2100 = vsel %vm1054, %v2089, 0.0
      %v2101 = vsel %vm1055, %v2093, 0.0
      %s2102 = scalar_lea.vmem %s3, 192
      %v2103 = vld [vmem:[%s2102] sm:$0xff]
      %v2104 = vld [vmem:[%s2102 + $0x8] sm:$0xff]
      %v2105 = vld [vmem:[%s2102 + $0x10] sm:$0xff]
      %v2106 = vld [vmem:[%s2102 + $0x18] sm:$0xff]
      %v2108 = vsel %vm439, %v2103, 0
      %v2111 = vsel %vm439, %v2104, 0
      %v2114 = vsel %vm439, %v2105, 0
      %v2117 = vsel %vm439, %v2106, 0
      %2119 = vmatpush.msra.mxu0 0.0
      %2120 = vmatpush.msra.mxu0 0.0
      %2121 = vmatpush.msra.mxu0 0.0
      %2122 = vmatpush.msra.mxu0 0.0
      %2123 = vmatpush.msra.mxu0 0.0
      %2124 = vmatpush.msra.mxu0 0.0
      %2125 = vmatpush.msra.mxu0 0.0
      %2126 = vmatpush.msra.mxu0 0.0
      %2127 = vmatpush.msra.mxu0 0.0
      %2128 = vmatpush.msra.mxu0 0.0
      %2129 = vmatpush.msra.mxu0 0.0
      %2130 = vmatpush.msra.mxu0 0.0
      %2131 = vmatpush.msra.mxu0 %v2100
      %2132 = vmatpush.msra.mxu0 %v2098
      %2133 = vmatpush.msra.mxu0 %v2096
      %2134 = vmatpush.msra.mxu0 %v2094
      %2135 = vmatmul.f32.gmra.mxu0 %v2108
      %v2136 = vpop.f32.mrf.mxu0
      %v2137 = vadd.f32 0.0, %v2136
      %2138 = vmatmul.f32.gmra.mxu0 %v2111
      %v2139 = vpop.f32.mrf.mxu0
      %v2140 = vadd.f32 0.0, %v2139
      %2141 = vmatmul.f32.gmra.mxu0 %v2114
      %v2142 = vpop.f32.mrf.mxu0
      %v2143 = vadd.f32 0.0, %v2142
      %2144 = vmatmul.f32.gmra.mxu0 %v2117
      %v2145 = vpop.f32.mrf.mxu0
      %v2146 = vadd.f32 0.0, %v2145
      %2147 = vdwg.mxu0
      %2148 = vmatpush.msra.mxu0 0.0
      %2149 = vmatpush.msra.mxu0 0.0
      %2150 = vmatpush.msra.mxu0 0.0
      %2151 = vmatpush.msra.mxu0 0.0
      %2152 = vmatpush.msra.mxu0 0.0
      %2153 = vmatpush.msra.mxu0 0.0
      %2154 = vmatpush.msra.mxu0 0.0
      %2155 = vmatpush.msra.mxu0 0.0
      %2156 = vmatpush.msra.mxu0 0.0
      %2157 = vmatpush.msra.mxu0 0.0
      %2158 = vmatpush.msra.mxu0 0.0
      %2159 = vmatpush.msra.mxu0 0.0
      %2160 = vmatpush.msra.mxu0 %v2101
      %2161 = vmatpush.msra.mxu0 %v2099
      %2162 = vmatpush.msra.mxu0 %v2097
      %2163 = vmatpush.msra.mxu0 %v2095
      %2164 = vmatmul.f32.gmra.mxu0 %v2108
      %v2165 = vpop.f32.mrf.mxu0
      %v2166 = vadd.f32 0.0, %v2165
      %2167 = vmatmul.f32.gmra.mxu0 %v2111
      %v2168 = vpop.f32.mrf.mxu0
      %v2169 = vadd.f32 0.0, %v2168
      %2170 = vmatmul.f32.gmra.mxu0 %v2114
      %v2171 = vpop.f32.mrf.mxu0
      %v2172 = vadd.f32 0.0, %v2171
      %2173 = vmatmul.f32.gmra.mxu0 %v2117
      %v2174 = vpop.f32.mrf.mxu0
      %v2175 = vadd.f32 0.0, %v2174
      %2176 = vdwg.mxu0
      %v2177 = vadd.f32 %v2062, %v2137
      %v2178 = vadd.f32 %v2063, %v2166
      %v2179 = vadd.f32 %v2064, %v2140
      %v2180 = vadd.f32 %v2065, %v2169
      %v2181 = vadd.f32 %v2066, %v2143
      %v2182 = vadd.f32 %v2067, %v2172
      %v2183 = vadd.f32 %v2068, %v2146
      %v2184 = vadd.f32 %v2069, %v2175
      %2185 = vrot.lane.b32.xlu0 %v1421, 112
      %v2186 = vpop.permute.xlu0 %2185
      %2187 = vrot.lane.b32.xlu0 %v1423, 112
      %v2188 = vpop.permute.xlu0 %2187
      %2189 = vrot.lane.b32.xlu0 %v1425, 112
      %v2190 = vpop.permute.xlu0 %2189
      %2191 = vrot.lane.b32.xlu0 %v1427, 112
      %v2192 = vpop.permute.xlu0 %2191
      %2193 = vrot.lane.b32.xlu0 %v1422, 112
      %v2194 = vpop.permute.xlu0 %2193
      %2195 = vrot.lane.b32.xlu0 %v1424, 112
      %v2196 = vpop.permute.xlu0 %2195
      %2197 = vrot.lane.b32.xlu0 %v1426, 112
      %v2198 = vpop.permute.xlu0 %2197
      %2199 = vrot.lane.b32.xlu0 %v1428, 112
      %v2200 = vpop.permute.xlu0 %2199
      %v2201 = vsel %vm1163, %v2186, %v2194
      %v2202 = vsel %vm1163, %v2188, %v2196
      %v2203 = vsel %vm1163, %v2190, %v2198
      %v2204 = vsel %vm1163, %v2192, %v2200
      %v2205 = vsel %vm1163, %v2194, %v2186
      %v2206 = vsel %vm1163, %v2196, %v2188
      %v2207 = vsel %vm1163, %v2198, %v2190
      %v2208 = vsel %vm1163, %v2200, %v2192
      %v2209 = vsel %vm1174, %v2201, 0.0
      %v2210 = vsel %vm1175, %v2205, 0.0
      %v2211 = vsel %vm1174, %v2202, 0.0
      %v2212 = vsel %vm1175, %v2206, 0.0
      %v2213 = vsel %vm1174, %v2203, 0.0
      %v2214 = vsel %vm1175, %v2207, 0.0
      %v2215 = vsel %vm1174, %v2204, 0.0
      %v2216 = vsel %vm1175, %v2208, 0.0
      %s2217 = scalar_lea.vmem %s3, 224
      %v2218 = vld [vmem:[%s2217] sm:$0xff]
      %v2219 = vld [vmem:[%s2217 + $0x8] sm:$0xff]
      %v2220 = vld [vmem:[%s2217 + $0x10] sm:$0xff]
      %v2221 = vld [vmem:[%s2217 + $0x18] sm:$0xff]
      %v2223 = vsel %vm439, %v2218, 0
      %v2226 = vsel %vm439, %v2219, 0
      %v2229 = vsel %vm439, %v2220, 0
      %v2232 = vsel %vm439, %v2221, 0
      %2234 = vmatpush.msra.mxu0 0.0
      %2235 = vmatpush.msra.mxu0 0.0
      %2236 = vmatpush.msra.mxu0 0.0
      %2237 = vmatpush.msra.mxu0 0.0
      %2238 = vmatpush.msra.mxu0 0.0
      %2239 = vmatpush.msra.mxu0 0.0
      %2240 = vmatpush.msra.mxu0 0.0
      %2241 = vmatpush.msra.mxu0 0.0
      %2242 = vmatpush.msra.mxu0 0.0
      %2243 = vmatpush.msra.mxu0 0.0
      %2244 = vmatpush.msra.mxu0 0.0
      %2245 = vmatpush.msra.mxu0 0.0
      %2246 = vmatpush.msra.mxu0 %v2215
      %2247 = vmatpush.msra.mxu0 %v2213
      %2248 = vmatpush.msra.mxu0 %v2211
      %2249 = vmatpush.msra.mxu0 %v2209
      %2250 = vmatmul.f32.gmra.mxu0 %v2223
      %v2251 = vpop.f32.mrf.mxu0
      %v2252 = vadd.f32 0.0, %v2251
      %2253 = vmatmul.f32.gmra.mxu0 %v2226
      %v2254 = vpop.f32.mrf.mxu0
      %v2255 = vadd.f32 0.0, %v2254
      %2256 = vmatmul.f32.gmra.mxu0 %v2229
      %v2257 = vpop.f32.mrf.mxu0
      %v2258 = vadd.f32 0.0, %v2257
      %2259 = vmatmul.f32.gmra.mxu0 %v2232
      %v2260 = vpop.f32.mrf.mxu0
      %v2261 = vadd.f32 0.0, %v2260
      %2262 = vdwg.mxu0
      %2263 = vmatpush.msra.mxu0 0.0
      %2264 = vmatpush.msra.mxu0 0.0
      %2265 = vmatpush.msra.mxu0 0.0
      %2266 = vmatpush.msra.mxu0 0.0
      %2267 = vmatpush.msra.mxu0 0.0
      %2268 = vmatpush.msra.mxu0 0.0
      %2269 = vmatpush.msra.mxu0 0.0
      %2270 = vmatpush.msra.mxu0 0.0
      %2271 = vmatpush.msra.mxu0 0.0
      %2272 = vmatpush.msra.mxu0 0.0
      %2273 = vmatpush.msra.mxu0 0.0
      %2274 = vmatpush.msra.mxu0 0.0
      %2275 = vmatpush.msra.mxu0 %v2216
      %2276 = vmatpush.msra.mxu0 %v2214
      %2277 = vmatpush.msra.mxu0 %v2212
      %2278 = vmatpush.msra.mxu0 %v2210
      %2279 = vmatmul.f32.gmra.mxu0 %v2223
      %v2280 = vpop.f32.mrf.mxu0
      %v2281 = vadd.f32 0.0, %v2280
      %2282 = vmatmul.f32.gmra.mxu0 %v2226
      %v2283 = vpop.f32.mrf.mxu0
      %v2284 = vadd.f32 0.0, %v2283
      %2285 = vmatmul.f32.gmra.mxu0 %v2229
      %v2286 = vpop.f32.mrf.mxu0
      %v2287 = vadd.f32 0.0, %v2286
      %2288 = vmatmul.f32.gmra.mxu0 %v2232
      %v2289 = vpop.f32.mrf.mxu0
      %v2290 = vadd.f32 0.0, %v2289
      %2291 = vdwg.mxu0
      %v2292 = vadd.f32 %v2177, %v2252
      %v2293 = vadd.f32 %v2178, %v2281
      %v2294 = vadd.f32 %v2179, %v2255
      %v2295 = vadd.f32 %v2180, %v2284
      %v2296 = vadd.f32 %v2181, %v2258
      %v2297 = vadd.f32 %v2182, %v2287
      %v2298 = vadd.f32 %v2183, %v2261
      %v2299 = vadd.f32 %v2184, %v2290
      %2300 = vrot.lane.b32.xlu0 %v1421, 111
      %v2301 = vpop.permute.xlu0 %2300
      %2302 = vrot.lane.b32.xlu0 %v1423, 111
      %v2303 = vpop.permute.xlu0 %2302
      %2304 = vrot.lane.b32.xlu0 %v1425, 111
      %v2305 = vpop.permute.xlu0 %2304
      %2306 = vrot.lane.b32.xlu0 %v1427, 111
      %v2307 = vpop.permute.xlu0 %2306
      %2308 = vrot.lane.b32.xlu0 %v1422, 111
      %v2309 = vpop.permute.xlu0 %2308
      %2310 = vrot.lane.b32.xlu0 %v1424, 111
      %v2311 = vpop.permute.xlu0 %2310
      %2312 = vrot.lane.b32.xlu0 %v1426, 111
      %v2313 = vpop.permute.xlu0 %2312
      %2314 = vrot.lane.b32.xlu0 %v1428, 111
      %v2315 = vpop.permute.xlu0 %2314
      %v2316 = vsel %vm1283, %v2301, %v2309
      %v2317 = vsel %vm1283, %v2303, %v2311
      %v2318 = vsel %vm1283, %v2305, %v2313
      %v2319 = vsel %vm1283, %v2307, %v2315
      %v2320 = vsel %vm1283, %v2309, %v2301
      %v2321 = vsel %vm1283, %v2311, %v2303
      %v2322 = vsel %vm1283, %v2313, %v2305
      %v2323 = vsel %vm1283, %v2315, %v2307
      %v2324 = vsel %vm1296, %v2316, 0.0
      %v2325 = vsel %vm1297, %v2320, 0.0
      %v2326 = vsel %vm1296, %v2317, 0.0
      %v2327 = vsel %vm1297, %v2321, 0.0
      %v2328 = vsel %vm1296, %v2318, 0.0
      %v2329 = vsel %vm1297, %v2322, 0.0
      %v2330 = vsel %vm1296, %v2319, 0.0
      %v2331 = vsel %vm1297, %v2323, 0.0
      %s2332 = scalar_lea.vmem %s3, 256
      %v2333 = vld [vmem:[%s2332] sm:$0xff]
      %v2334 = vld [vmem:[%s2332 + $0x8] sm:$0xff]
      %v2335 = vld [vmem:[%s2332 + $0x10] sm:$0xff]
      %v2336 = vld [vmem:[%s2332 + $0x18] sm:$0xff]
      %v2338 = vsel %vm439, %v2333, 0
      %v2341 = vsel %vm439, %v2334, 0
      %v2344 = vsel %vm439, %v2335, 0
      %v2347 = vsel %vm439, %v2336, 0
      %2349 = vmatpush.msra.mxu0 0.0
      %2350 = vmatpush.msra.mxu0 0.0
      %2351 = vmatpush.msra.mxu0 0.0
      %2352 = vmatpush.msra.mxu0 0.0
      %2353 = vmatpush.msra.mxu0 0.0
      %2354 = vmatpush.msra.mxu0 0.0
      %2355 = vmatpush.msra.mxu0 0.0
      %2356 = vmatpush.msra.mxu0 0.0
      %2357 = vmatpush.msra.mxu0 0.0
      %2358 = vmatpush.msra.mxu0 0.0
      %2359 = vmatpush.msra.mxu0 0.0
      %2360 = vmatpush.msra.mxu0 0.0
      %2361 = vmatpush.msra.mxu0 %v2330
      %2362 = vmatpush.msra.mxu0 %v2328
      %2363 = vmatpush.msra.mxu0 %v2326
      %2364 = vmatpush.msra.mxu0 %v2324
      %2365 = vmatmul.f32.gmra.mxu0 %v2338
      %v2366 = vpop.f32.mrf.mxu0
      %v2367 = vadd.f32 0.0, %v2366
      %2368 = vmatmul.f32.gmra.mxu0 %v2341
      %v2369 = vpop.f32.mrf.mxu0
      %v2370 = vadd.f32 0.0, %v2369
      %2371 = vmatmul.f32.gmra.mxu0 %v2344
      %v2372 = vpop.f32.mrf.mxu0
      %v2373 = vadd.f32 0.0, %v2372
      %2374 = vmatmul.f32.gmra.mxu0 %v2347
      %v2375 = vpop.f32.mrf.mxu0
      %v2376 = vadd.f32 0.0, %v2375
      %2377 = vdwg.mxu0
      %2378 = vmatpush.msra.mxu0 0.0
      %2379 = vmatpush.msra.mxu0 0.0
      %2380 = vmatpush.msra.mxu0 0.0
      %2381 = vmatpush.msra.mxu0 0.0
      %2382 = vmatpush.msra.mxu0 0.0
      %2383 = vmatpush.msra.mxu0 0.0
      %2384 = vmatpush.msra.mxu0 0.0
      %2385 = vmatpush.msra.mxu0 0.0
      %2386 = vmatpush.msra.mxu0 0.0
      %2387 = vmatpush.msra.mxu0 0.0
      %2388 = vmatpush.msra.mxu0 0.0
      %2389 = vmatpush.msra.mxu0 0.0
      %2390 = vmatpush.msra.mxu0 %v2331
      %2391 = vmatpush.msra.mxu0 %v2329
      %2392 = vmatpush.msra.mxu0 %v2327
      %2393 = vmatpush.msra.mxu0 %v2325
      %2394 = vmatmul.f32.gmra.mxu0 %v2338
      %v2395 = vpop.f32.mrf.mxu0
      %v2396 = vadd.f32 0.0, %v2395
      %2397 = vmatmul.f32.gmra.mxu0 %v2341
      %v2398 = vpop.f32.mrf.mxu0
      %v2399 = vadd.f32 0.0, %v2398
      %2400 = vmatmul.f32.gmra.mxu0 %v2344
      %v2401 = vpop.f32.mrf.mxu0
      %v2402 = vadd.f32 0.0, %v2401
      %2403 = vmatmul.f32.gmra.mxu0 %v2347
      %v2404 = vpop.f32.mrf.mxu0
      %v2405 = vadd.f32 0.0, %v2404
      %2406 = vdwg.mxu0
      %v2407 = vadd.f32 %v2292, %v2367
      %v2408 = vadd.f32 %v2293, %v2396
      %v2409 = vadd.f32 %v2294, %v2370
      %v2410 = vadd.f32 %v2295, %v2399
      %v2411 = vadd.f32 %v2296, %v2373
      %v2412 = vadd.f32 %v2297, %v2402
      %v2413 = vadd.f32 %v2298, %v2376
      %v2414 = vadd.f32 %v2299, %v2405
      %v2415 = vld [vmem:[%s4] sm:$0xff]
      %v2416 = vld [vmem:[%s4 + $0x8] sm:$0xff]
      %v2417 = vld [vmem:[%s4 + $0x10] sm:$0xff]
      %v2418 = vld [vmem:[%s4 + $0x18] sm:$0xff]
      %2420 = vset.pattern.permute.xlu0 0
      %2421 = vperm.xlu0 %2420, %v2415
      %v2422 = vpop.permute.xlu0 %2421
      %2425 = vset.pattern.permute.xlu0 0
      %2426 = vperm.xlu0 %2425, %v2416
      %v2427 = vpop.permute.xlu0 %2426
      %2430 = vset.pattern.permute.xlu0 0
      %2431 = vperm.xlu0 %2430, %v2417
      %v2432 = vpop.permute.xlu0 %2431
      %2435 = vset.pattern.permute.xlu0 0
      %2436 = vperm.xlu0 %2435, %v2418
      %v2437 = vpop.permute.xlu0 %2436
      %v2439 = vadd.f32 %v2407, %v2422
      %v2440 = vadd.f32 %v2408, %v2422
      %v2441 = vadd.f32 %v2409, %v2427
      %v2442 = vadd.f32 %v2410, %v2427
      %v2443 = vadd.f32 %v2411, %v2432
      %v2444 = vadd.f32 %v2412, %v2432
      %v2445 = vadd.f32 %v2413, %v2437
      %v2446 = vadd.f32 %v2414, %v2437
      %v2447 = vadd.f32 %v2439, %v2440
      %2448 = vadd.xlane.f32.xlu0 %v2447
      %v2449 = vpop.xlane.xlu0 %2448
      %v2450 = vadd.f32 %v2441, %v2442
      %2451 = vadd.xlane.f32.xlu0 %v2450
      %v2452 = vpop.xlane.xlu0 %2451
      %v2453 = vadd.f32 %v2443, %v2444
      %2454 = vadd.xlane.f32.xlu0 %v2453
      %v2455 = vpop.xlane.xlu0 %2454
      %v2456 = vadd.f32 %v2445, %v2446
      %2457 = vadd.xlane.f32.xlu0 %v2456
      %v2458 = vpop.xlane.xlu0 %2457
      %v2459 = vrcp.pop 256.0
      %v2460 = vmul.f32 256.0, %v2459
      %v2461 = vsub.f32 1.0, %v2460
      %v2462 = vmul.f32 %v2459, %v2461
      %v2463 = vadd.f32 %v2459, %v2462
      %vm2464 = vweird.f32 %v2459
      %v2465 = vsel %vm2464, %v2459, %v2463
      %v2466 = vmul.f32 %v2449, %v2465
      %v2467 = vmul.f32 %v2452, %v2465
      %v2468 = vmul.f32 %v2455, %v2465
      %v2469 = vmul.f32 %v2458, %v2465
      %v2470 = vld [vmem:[%s5] sm:$0xff]
      %v2471 = vld [vmem:[%s5 + $0x8] sm:$0xff]
      %v2472 = vld [vmem:[%s5 + $0x10] sm:$0xff]
      %v2473 = vld [vmem:[%s5 + $0x18] sm:$0xff]
      %v2474 = vmul.f32 %v2466, %v2470
      %v2475 = vmul.f32 %v2467, %v2471
      %v2476 = vmul.f32 %v2468, %v2472
      %v2477 = vmul.f32 %v2469, %v2473
      %vm2478 = vcmask 15360
      %v2479 = vsel %vm2478, %v2474, 0.0
      %v2480 = vsel %vm2478, %v2475, 0.0
      %v2481 = vadd.f32 %v2479, %v2480
      %v2482 = vsel %vm2478, %v2476, 0.0
      %v2483 = vadd.f32 %v2481, %v2482
      %v2484 = vsel %vm2478, %v2477, 0.0
      %v2485 = vadd.f32 %v2483, %v2484
      %v2486 = vrot.slane %v2485, 4
      %v2487 = vadd.f32 %v2485, %v2486
      %v2488 = vrot.slane %v2487, 2
      %v2489 = vadd.f32 %v2487, %v2488
      %v2490 = vrot.slane %v2489, 1
      %v2491 = vadd.f32 %v2489, %v2490
      %v2492 = vld [vmem:[%s6] sm:$0x1]
      %v2493 = vadd.f32 %v2491, %v2492
      %v2494 = vmax.f32 %v2493, 0.0
      %v2495 = vld [vmem:[%s7] sm:$0xff]
      %v2496 = vld [vmem:[%s7 + $0x8] sm:$0xff]
      %v2497 = vld [vmem:[%s7 + $0x10] sm:$0xff]
      %v2498 = vld [vmem:[%s7 + $0x18] sm:$0xff]
      %v2499 = vperm.slane %v2494, 0
      %v2500 = vmul.f32 %v2495, %v2499
      %v2501 = vmul.f32 %v2496, %v2499
      %v2502 = vmul.f32 %v2497, %v2499
      %v2503 = vmul.f32 %v2498, %v2499
      %v2504 = vsel %vm2478, %v2500, 0.0
      %2505 = vadd.xlane.f32.xlu0 %v2504
      %v2506 = vpop.xlane.xlu0 %2505
      %v2507 = vsel %vm2478, %v2501, 0.0
      %2508 = vadd.xlane.f32.xlu0 %v2507
      %v2509 = vpop.xlane.xlu0 %2508
      %v2510 = vsel %vm2478, %v2502, 0.0
      %2511 = vadd.xlane.f32.xlu0 %v2510
      %v2512 = vpop.xlane.xlu0 %2511
      %v2513 = vsel %vm2478, %v2503, 0.0
      %2514 = vadd.xlane.f32.xlu0 %v2513
      %v2515 = vpop.xlane.xlu0 %2514
      %v2516 = vld [vmem:[%s8] sm:$0xff]
      %v2517 = vld [vmem:[%s8 + $0x8] sm:$0xff]
      %v2518 = vld [vmem:[%s8 + $0x10] sm:$0xff]
      %v2519 = vld [vmem:[%s8 + $0x18] sm:$0xff]
      %v2520 = vadd.f32 %v2506, %v2516
      %v2521 = vadd.f32 %v2509, %v2517
      %v2522 = vadd.f32 %v2512, %v2518
      %v2523 = vadd.f32 %v2515, %v2519
      %v2524 = vxor.u32 %v2520, 2147483648
      %v2525 = vxor.u32 %v2521, 2147483648
      %v2526 = vxor.u32 %v2522, 2147483648
      %v2527 = vxor.u32 %v2523, 2147483648
      %v2528 = vmul.f32 %v2524, 1.442695
      %v2529 = vpow.pop %v2528
      %v2530 = vmul.f32 %v2525, 1.442695
      %v2531 = vpow.pop %v2530
      %v2532 = vmul.f32 %v2526, 1.442695
      %v2533 = vpow.pop %v2532
      %v2534 = vmul.f32 %v2527, 1.442695
      %v2535 = vpow.pop %v2534
      %v2536 = vadd.f32 %v2529, 1.0
      %v2537 = vadd.f32 %v2531, 1.0
      %v2538 = vadd.f32 %v2533, 1.0
      %v2539 = vadd.f32 %v2535, 1.0
      %v2540 = vrcp.pop %v2536
      %v2541 = vmul.f32 %v2536, %v2540
      %v2542 = vsub.f32 1.0, %v2541
      %v2543 = vmul.f32 %v2540, %v2542
      %v2544 = vadd.f32 %v2540, %v2543
      %vm2545 = vweird.f32 %v2536
      %vm2546 = vweird.f32 %v2540
      %vm2547 = vmor %vm2545, %vm2546
      %v2548 = vsel %vm2547, %v2540, %v2544
      %v2549 = vand.u32 2147483647, %v2536
      %vm2550 = vcmp.eq.f32.partialorder %v2549, 8.507059e+37
      %v2551 = vand.u32 %v2536, 2147483648
      %v2552 = vor.u32 1.1754944e-38, %v2551
      %v2553 = vsel %vm2550, %v2552, %v2548
      %v2554 = vmul.f32 1.0, %v2553
      %v2555 = vrcp.pop %v2537
      %v2556 = vmul.f32 %v2537, %v2555
      %v2557 = vsub.f32 1.0, %v2556
      %v2558 = vmul.f32 %v2555, %v2557
      %v2559 = vadd.f32 %v2555, %v2558
      %vm2560 = vweird.f32 %v2537
      %vm2561 = vweird.f32 %v2555
      %vm2562 = vmor %vm2560, %vm2561
      %v2563 = vsel %vm2562, %v2555, %v2559
      %v2564 = vand.u32 2147483647, %v2537
      %vm2565 = vcmp.eq.f32.partialorder %v2564, 8.507059e+37
      %v2566 = vand.u32 %v2537, 2147483648
      %v2567 = vor.u32 1.1754944e-38, %v2566
      %v2568 = vsel %vm2565, %v2567, %v2563
      %v2569 = vmul.f32 1.0, %v2568
      %v2570 = vrcp.pop %v2538
      %v2571 = vmul.f32 %v2538, %v2570
      %v2572 = vsub.f32 1.0, %v2571
      %v2573 = vmul.f32 %v2570, %v2572
      %v2574 = vadd.f32 %v2570, %v2573
      %vm2575 = vweird.f32 %v2538
      %vm2576 = vweird.f32 %v2570
      %vm2577 = vmor %vm2575, %vm2576
      %v2578 = vsel %vm2577, %v2570, %v2574
      %v2579 = vand.u32 2147483647, %v2538
      %vm2580 = vcmp.eq.f32.partialorder %v2579, 8.507059e+37
      %v2581 = vand.u32 %v2538, 2147483648
      %v2582 = vor.u32 1.1754944e-38, %v2581
      %v2583 = vsel %vm2580, %v2582, %v2578
      %v2584 = vmul.f32 1.0, %v2583
      %v2585 = vrcp.pop %v2539
      %v2586 = vmul.f32 %v2539, %v2585
      %v2587 = vsub.f32 1.0, %v2586
      %v2588 = vmul.f32 %v2585, %v2587
      %v2589 = vadd.f32 %v2585, %v2588
      %vm2590 = vweird.f32 %v2539
      %vm2591 = vweird.f32 %v2585
      %vm2592 = vmor %vm2590, %vm2591
      %v2593 = vsel %vm2592, %v2585, %v2589
      %v2594 = vand.u32 2147483647, %v2539
      %vm2595 = vcmp.eq.f32.partialorder %v2594, 8.507059e+37
      %v2596 = vand.u32 %v2539, 2147483648
      %v2597 = vor.u32 1.1754944e-38, %v2596
      %v2598 = vsel %vm2595, %v2597, %v2593
      %v2599 = vmul.f32 1.0, %v2598
      %2601 = vset.pattern.permute.xlu0 0
      %2602 = vperm.xlu0 %2601, %v2554
      %v2603 = vpop.permute.xlu0 %2602
      %2606 = vset.pattern.permute.xlu0 0
      %2607 = vperm.xlu0 %2606, %v2569
      %v2608 = vpop.permute.xlu0 %2607
      %2611 = vset.pattern.permute.xlu0 0
      %2612 = vperm.xlu0 %2611, %v2584
      %v2613 = vpop.permute.xlu0 %2612
      %2616 = vset.pattern.permute.xlu0 0
      %2617 = vperm.xlu0 %2616, %v2599
      %v2618 = vpop.permute.xlu0 %2617
      %v2620 = vmul.f32 %v2439, %v2603
      %v2621 = vmul.f32 %v2440, %v2603
      %v2622 = vmul.f32 %v2441, %v2608
      %v2623 = vmul.f32 %v2442, %v2608
      %v2624 = vmul.f32 %v2443, %v2613
      %v2625 = vmul.f32 %v2444, %v2613
      %v2626 = vmul.f32 %v2445, %v2618
      %v2627 = vmul.f32 %v2446, %v2618
      %v2628 = vadd.f32 %v2620, %v333
      %v2629 = vadd.f32 %v2621, %v334
      %v2630 = vadd.f32 %v2622, %v335
      %v2631 = vadd.f32 %v2623, %v336
      %v2632 = vadd.f32 %v2624, %v337
      %v2633 = vadd.f32 %v2625, %v338
      %v2634 = vadd.f32 %v2626, %v339
      %v2635 = vadd.f32 %v2627, %v340
      %2636 = vst [vmem:[%s332] sm:$0xff] %v2628
      %2637 = vst [vmem:[%s332 + $0x8] sm:$0xff] %v2629
      %2638 = vst [vmem:[%s332 + $0x10] sm:$0xff] %v2630
      %2639 = vst [vmem:[%s332 + $0x18] sm:$0xff] %v2631
      %2640 = vst [vmem:[%s332 + $0x20] sm:$0xff] %v2632
      %2641 = vst [vmem:[%s332 + $0x28] sm:$0xff] %v2633
      %2642 = vst [vmem:[%s332 + $0x30] sm:$0xff] %v2634
      %2643 = vst [vmem:[%s332 + $0x38] sm:$0xff] %v2635
      %p2644 = scmp.lt.s32.totalorder %s20, 1
      %s2645 = scalar_select %p2644, %s20, 1
      %s2646 = smul.addr %s2645, 8
      %s2647 = smul.addr %s2646, 8
      %s2648 = scalar_lea.vmem %s9, %s2647
      // Predicated region
      $region57: #{spectral_attention_res_block.1} parent=55 // pred_check
        %p2649 = pneg %p232
      $region58: #{spectral_attention_res_block.1} parent=55 // pred_check_branch
        %2651 = sbr.rel (%p2649) target = $region60
      $region59: #{spectral_attention_res_block.1} parent=55 // pred_region
        _
      $region60: #{spectral_attention_res_block.1} parent=55 // pred_fallthru
        _
    $region56: #{spectral_attention_res_block.1} parent=5 // pred_fallthru
      _
    %p2652 = scmp.le.s32.totalorder 2, %s15
    // Predicated region
    $region61: #{spectral_attention_res_block.1} parent=5 // pred_check
      %p2653 = pneg %p2652
    $region62: #{spectral_attention_res_block.1} parent=5 // pred_check_branch
      %2655 = sbr.rel (%p2653) target = $region64
    $region63: #{spectral_attention_res_block.1} parent=5 // pred_region
      %s2656 = ssub.s32 %s15, 2
      // Predicated region
      $region65: #{spectral_attention_res_block.1} parent=63 // pred_check
        %p2657 = pneg %p238
      $region66: #{spectral_attention_res_block.1} parent=63 // pred_check_branch
        %2659 = sbr.rel (%p2657) target = $region68
      $region67: #{spectral_attention_res_block.1} parent=63 // pred_region
        %p2660 = scmp.lt.s32.totalorder %s21, 1
        %s2661 = scalar_select %p2660, %s21, 1
        %s2662 = smul.addr %s2661, 8
        %s2663 = smul.addr %s2662, 8
        %s2664 = scalar_lea.vmem %s9, %s2663
      $region68: #{spectral_attention_res_block.1} parent=63 // pred_fallthru
        _
    $region64: #{spectral_attention_res_block.1} parent=5 // pred_fallthru
      _
  $region6: #{spectral_attention_res_block.1} parent=0 // loop_footer
    %s19 = sadd.s32 1, %s15
  $region7: #{spectral_attention_res_block.1} parent=0 // loop_footer_branch
    %14 = sbr.rel target = $region3
  $region8: #{spectral_attention_res_block.1} parent=0 // loop_exit
    _

</llo_original>
